<compile_context>
chip_gen: v7x
topology: tpu7x:2x2x1
jax: 0.10.0
libtpu: 0.0.40
codegen_flags: <defaults>
</compile_context>

<pallas_src>
import functools

import jax
import jax.numpy as jnp
from jax import lax
from jax.experimental import pallas as pl
from jax.experimental.pallas import tpu as pltpu


SQUARE_K = 3
BAND_K = 11
_TAPW = 12  # max(9, 11) taps + bias, padded to a common width per branch


# --------------------------------------------------------------------------
# In-kernel helpers (operate on a fused (ct, H, W) channel slab).
# --------------------------------------------------------------------------
def _shiftz(x, s, axis):
    """result[..., i, ...] = x[..., i+s, ...]; zero-filled where i+s is OOB."""
    if s == 0:
        return x
    size = x.shape[axis]
    if abs(s) >= size:
        return jnp.zeros_like(x)
    zshape = list(x.shape)
    zshape[axis] = abs(s)
    zeros = jnp.zeros(zshape, x.dtype)
    if s > 0:
        body = lax.slice_in_dim(x, s, size, axis=axis)
        return jnp.concatenate([body, zeros], axis=axis)
    body = lax.slice_in_dim(x, 0, size + s, axis=axis)
    return jnp.concatenate([zeros, body], axis=axis)


def _col(w, k):
    """Per-channel weight column (ct,) -> (ct, 1, 1) broadcast shape."""
    return w[:, k].reshape(w.shape[0], 1, 1)


def _square_conv(x, w):
    """3x3 depthwise conv.  x: (ct, H, W) f32; w cols 0..8 = taps (dh*3+dw), col 9 = bias."""
    # Column-combine then row-shift reassociation: 2 lane shifts + 2 sublane shifts.
    cols = [_shiftz(x, dw - 1, 2) for dw in range(SQUARE_K)]
    acc = None
    for dh in range(SQUARE_K):
        row = None
        for dw in range(SQUARE_K):
            t = cols[dw] * _col(w, dh * SQUARE_K + dw)
            row = t if row is None else row + t
        row = _shiftz(row, dh - 1, 1)
        acc = row if acc is None else acc + row
    return acc + _col(w, 9)


def _band_conv(x, w, axis):
    """11-tap depthwise band conv along `axis` (1 = H, 2 = W); cols 0..10 taps, col 11 bias."""
    half = BAND_K // 2
    acc = None
    for k in range(BAND_K):
        t = _shiftz(x, k - half, axis) * _col(w, k)
        acc = t if acc is None else acc + t
    return acc + _col(w, BAND_K)


# --------------------------------------------------------------------------
# Kernels.
# --------------------------------------------------------------------------
def _branch_tile_kernel(x_ref, w_ref, out_ref):
    """Aligned path.  Grid (N, branch, channel-tile).

    x_ref/out_ref: (1, ct, H, W) block at absolute channels c_id + b*gc + j*ct
    (output is the input-aliased full (N, C, H, W) array).
    w_ref: (1, 1, ct, 12) packed taps+bias for this (branch, tile).
    """
    b = pl.program_id(1)
    x = x_ref[0].astype(jnp.float32)   # (ct, H, W)
    w = w_ref[0, 0]                    # (ct, 12)

    @pl.when(b == 0)
    def _():
        out_ref[0] = _square_conv(x, w).astype(out_ref.dtype)

    @pl.when(b == 1)
    def _():
        out_ref[0] = _band_conv(x, w, 2).astype(out_ref.dtype)

    @pl.when(b == 2)
    def _():
        out_ref[0] = _band_conv(x, w, 1).astype(out_ref.dtype)


def _full_channel_kernel(x_ref, w_ref, out_ref, *, gc, c_id):
    """Fallback path (rare, unaligned channel offsets).  Grid (N,).

    x_ref/out_ref: (1, C, H, W); identity channels are copied inside the kernel,
    the three branch ranges are convolved; still no wrapper concat.
    """
    if c_id > 0:
        out_ref[0, :c_id] = x_ref[0, :c_id]
    for b in range(3):
        lo = c_id + b * gc
        x = x_ref[0, lo:lo + gc].astype(jnp.float32)
        w = w_ref[b, 0]
        if b == 0:
            y = _square_conv(x, w)
        elif b == 1:
            y = _band_conv(x, w, 2)
        else:
            y = _band_conv(x, w, 1)
        out_ref[0, lo:lo + gc] = y.astype(out_ref.dtype)


# --------------------------------------------------------------------------
# Wrappers.
# --------------------------------------------------------------------------
def _largest_divisor(n, cap, also_divides=0):
    best = 1
    for d in range(1, max(1, min(n, cap)) + 1):
        if n % d == 0 and also_divides % d == 0:
            best = d
    return best


def _call_aligned(x, wtab, *, gc, c_id, ct):
    N, C, H, W = x.shape
    n_ct = gc // ct
    wtab4 = wtab.reshape(3, n_ct, ct, _TAPW)
    c0b = c_id // ct      # channel-block offset of the first branch
    gpb = gc // ct        # channel blocks per branch

    def xo_map(n, b, j):
        return (n, c0b + b * gpb + j, 0, 0)

    return pl.pallas_call(
        _branch_tile_kernel,
        out_shape=jax.ShapeDtypeStruct((N, C, H, W), x.dtype),
        grid=(N, 3, n_ct),
        in_specs=[
            pl.BlockSpec((1, ct, H, W), xo_map),
            pl.BlockSpec((1, 1, ct, _TAPW), lambda n, b, j: (b, j, 0, 0)),
        ],
        out_specs=pl.BlockSpec((1, ct, H, W), xo_map),
        input_output_aliases={0: 0},
        compiler_params=pltpu.CompilerParams(
            dimension_semantics=("parallel", "parallel", "parallel"),
            vmem_limit_bytes=48 * 1024 * 1024,
        ),
    )(x, wtab4)


def _call_fullc(x, wtab, *, gc, c_id):
    N, C, H, W = x.shape
    wtab4 = wtab.reshape(3, 1, gc, _TAPW)
    itemsize = x.dtype.itemsize
    need = 4 * C * H * W * itemsize + 4 * wtab4.size * 4 + (2 << 20)
    vmem_limit = max(32 * 1024 * 1024, min(int(1.25 * need), 100 * 1024 * 1024))
    kernel = functools.partial(_full_channel_kernel, gc=gc, c_id=c_id)
    return pl.pallas_call(
        kernel,
        out_shape=jax.ShapeDtypeStruct((N, C, H, W), x.dtype),
        grid=(N,),
        in_specs=[
            pl.BlockSpec((1, C, H, W), lambda n: (n, 0, 0, 0)),
            pl.BlockSpec((3, 1, gc, _TAPW), lambda n: (0, 0, 0, 0)),
        ],
        out_specs=pl.BlockSpec((1, C, H, W), lambda n: (n, 0, 0, 0)),
        input_output_aliases={0: 0},
        compiler_params=pltpu.CompilerParams(
            dimension_semantics=("parallel",),
            vmem_limit_bytes=vmem_limit,
        ),
    )(x, wtab4)


def inception_dwconv2d(x, params, *, max_channels_per_step=None,
                       vmem_budget_bytes=8 * 1024 * 1024):
    """x: (N, C, H, W) NCHW.  Returns (N, C, H, W) matching InceptionDWConv2d."""
    N, C, H, W = x.shape
    gc = int(params["gc"])
    if gc == 0:
        return x
    c_id = C - 3 * gc
    assert c_id >= 0, "in_channels must be >= 3 * gc"
    wtab = params["wtab"].astype(jnp.float32)     # (3, gc, 12)

    itemsize = x.dtype.itemsize
    per_chan = 4 * H * W * itemsize               # in+out blocks, double-buffered
    ct_cap = max(1, vmem_budget_bytes // per_chan)
    if max_channels_per_step is not None:
        ct_cap = min(ct_cap, int(max_channels_per_step))
    ct_free = _largest_divisor(gc, ct_cap)
    ct = _largest_divisor(gc, ct_cap, also_divides=c_id)

    # Aligned path needs the absolute branch offsets (c_id + b*gc) to be a
    # multiple of ct.  In the common case (c_id = 5*gc) any divisor of gc works;
    # otherwise only take the aligned path if the tile is still a decent DMA.
    aligned_ok = (ct == ct_free) or (ct * H * W * itemsize >= 256 * 1024)
    if aligned_ok:
        return _call_aligned(x, wtab, gc=gc, c_id=c_id, ct=ct)
    return _call_fullc(x, wtab, gc=gc, c_id=c_id)


# --------------------------------------------------------------------------
# Parameters + pure-JAX reference.
# --------------------------------------------------------------------------
def make_params(in_channels, branch_ratio=0.125, seed=42):
    """Deterministic synthetic parameters matching the nn.Conv2d shapes."""
    gc = int(in_channels * branch_ratio)
    keys = jax.random.split(jax.random.PRNGKey(seed), 6)
    w_hw = 0.1 * jax.random.normal(keys[0], (gc, 1, SQUARE_K, SQUARE_K), jnp.float32)
    b_hw = 0.1 * jax.random.normal(keys[1], (gc,), jnp.float32)
    w_w = 0.1 * jax.random.normal(keys[2], (gc, 1, 1, BAND_K), jnp.float32)
    b_w = 0.1 * jax.random.normal(keys[3], (gc,), jnp.float32)
    w_h = 0.1 * jax.random.normal(keys[4], (gc, 1, BAND_K, 1), jnp.float32)
    b_h = 0.1 * jax.random.normal(keys[5], (gc,), jnp.float32)

    # Packed per-branch tap tables: [taps..., bias, (pad)] along the last axis.
    row0 = jnp.concatenate(
        [w_hw.reshape(gc, 9), b_hw[:, None], jnp.zeros((gc, 2), jnp.float32)], axis=1)
    row1 = jnp.concatenate([w_w.reshape(gc, BAND_K), b_w[:, None]], axis=1)
    row2 = jnp.concatenate([w_h.reshape(gc, BAND_K), b_h[:, None]], axis=1)
    wtab = jnp.stack([row0, row1, row2], axis=0)     # (3, gc, 12)

    return dict(
        gc=gc, wtab=wtab,
        # original OIHW weights kept for the pure-JAX reference check
        _w_hw_oihw=w_hw, _b_hw=b_hw,
        _w_w_oihw=w_w, _b_w=b_w,
        _w_h_oihw=w_h, _b_h=b_h,
    )


def reference_forward(x_nchw, params):
    """Pure-JAX reference mirroring the PyTorch module (for validation)."""
    N, C, H, W = x_nchw.shape
    gc = params["gc"]
    c_id = C - 3 * gc
    x_id = x_nchw[:, :c_id]
    x_hw = x_nchw[:, c_id:c_id + gc]
    x_w = x_nchw[:, c_id + gc:c_id + 2 * gc]
    x_h = x_nchw[:, c_id + 2 * gc:]

    def dwconv(xin, w, b, pad):
        y = jax.lax.conv_general_dilated(
            xin, w, window_strides=(1, 1), padding=pad,
            dimension_numbers=("NCHW", "OIHW", "NCHW"),
            feature_group_count=gc)
        return y + b[None, :, None, None]

    sq = SQUARE_K // 2
    bd = BAND_K // 2
    y_hw = dwconv(x_hw, params["_w_hw_oihw"], params["_b_hw"], ((sq, sq), (sq, sq)))
    y_w = dwconv(x_w, params["_w_w_oihw"], params["_b_w"], ((0, 0), (bd, bd)))
    y_h = dwconv(x_h, params["_w_h_oihw"], params["_b_h"], ((bd, bd), (0, 0)))
    return jnp.concatenate([x_id, y_hw, y_w, y_h], axis=1)


if __name__ == "__main__":
    base_key = jax.random.PRNGKey(0)

    def run_case(idx, N, C, H, W, **kw):
        x = jax.random.normal(jax.random.fold_in(base_key, idx), (N, C, H, W), jnp.float32)
        params = make_params(C)
        ref = jax.block_until_ready(reference_forward(x, params))
        fwd = jax.jit(lambda a: inception_dwconv2d(a, params, **kw))
        out = jax.block_until_ready(fwd(x))
        assert out.shape == (N, C, H, W)
        err = float(jnp.max(jnp.abs(out - ref)))
        assert err < 1e-4, (idx, err)

    # Common case: gc=4, identity=20; aligned path, ct == gc, grid = (N, 3, 1).
    run_case(0, 2, 32, 16, 128)
    # Aligned path with explicit channel tiling (ct=2 -> grid (N, 3, 2)).
    run_case(1, 2, 32, 16, 128, max_channels_per_step=2)
    # Odd channel count (gc=7, c_id=39): unaligned offsets -> full-channel
    # fallback path (identity copied inside the kernel, still no concat).
    run_case(2, 1, 60, 8, 128)

    print("KERNEL_OK")
</pallas_src>

<mosaic_0001>
module attributes {stable_mosaic.version = 11 : i64} {
  func.func @_branch_tile_kernel(%arg0: i32, %arg1: i32, %arg2: i32, %arg3: memref<1x4x16x128xf32, #tpu.memory_space<vmem>>, %arg4: memref<1x1x4x12xf32, #tpu.memory_space<vmem>>, %arg5: memref<1x4x16x128xf32, #tpu.memory_space<vmem>>) attributes {dimension_semantics = [#tpu.dimension_semantics<parallel>, #tpu.dimension_semantics<parallel>, #tpu.dimension_semantics<parallel>], iteration_bounds = array<i64: 2, 3, 1>, scalar_prefetch = 0 : i64, scratch_operands = 0 : i64, tpu.core_type = #tpu.core_type<tc>, window_params = [{transform_indices = @transform_0, window_bounds = array<i64: 1, 4, 16, 128>}, {transform_indices = @transform_1, window_bounds = array<i64: 1, 1, 4, 12>}, {transform_indices = @transform_2, window_bounds = array<i64: 1, 4, 16, 128>}]} {
    %c0 = arith.constant 0 : index
    %c0_0 = arith.constant 0 : index
    %c0_1 = arith.constant 0 : index
    %c0_2 = arith.constant 0 : index
    %0 = vector.load %arg3[%c0, %c0_0, %c0_1, %c0_2] : memref<1x4x16x128xf32, #tpu.memory_space<vmem>>, vector<1x4x16x128xf32>
    %1 = vector.shape_cast %0 : vector<1x4x16x128xf32> to vector<4x16x128xf32>
    %c0_3 = arith.constant 0 : index
    %c0_4 = arith.constant 0 : index
    %c0_5 = arith.constant 0 : index
    %c0_6 = arith.constant 0 : index
    %2 = vector.load %arg4[%c0_3, %c0_4, %c0_5, %c0_6] : memref<1x1x4x12xf32, #tpu.memory_space<vmem>>, vector<1x1x4x12xf32>
    %3 = vector.shape_cast %2 : vector<1x1x4x12xf32> to vector<4x12xf32>
    %c0_i32 = arith.constant 0 : i32
    %4 = arith.cmpi eq, %arg1, %c0_i32 : i32
    %5 = arith.extui %4 : i1 to i32
    %c0_i32_7 = arith.constant 0 : i32
    %6 = arith.cmpi ne, %5, %c0_i32_7 : i32
    scf.if %6 {
      %cst = arith.constant 0.000000e+00 : f32
      %13 = vector.broadcast %cst : f32 to vector<4x16x1xf32>
      %14 = vector.extract_strided_slice %1 {offsets = [0, 0, 0], sizes = [4, 16, 127], strides = [1, 1, 1]} : vector<4x16x128xf32> to vector<4x16x127xf32>
      %15 = tpu.concatenate %13, %14 in 2 : vector<4x16x1xf32>, vector<4x16x127xf32> -> vector<4x16x128xf32>
      %cst_10 = arith.constant 0.000000e+00 : f32
      %16 = vector.broadcast %cst_10 : f32 to vector<4x16x1xf32>
      %17 = vector.extract_strided_slice %1 {offsets = [0, 0, 1], sizes = [4, 16, 127], strides = [1, 1, 1]} : vector<4x16x128xf32> to vector<4x16x127xf32>
      %18 = tpu.concatenate %17, %16 in 2 : vector<4x16x127xf32>, vector<4x16x1xf32> -> vector<4x16x128xf32>
      %19 = vector.extract_strided_slice %3 {offsets = [0, 0], sizes = [4, 1], strides = [1, 1]} : vector<4x12xf32> to vector<4x1xf32>
      %20 = vector.shape_cast %19 : vector<4x1xf32> to vector<4xf32>
      %21 = vector.shape_cast %20 : vector<4xf32> to vector<4x1x1xf32>
      %22 = vector.broadcast %21 : vector<4x1x1xf32> to vector<4x16x128xf32>
      %23 = arith.mulf %15, %22 : vector<4x16x128xf32>
      %24 = vector.extract_strided_slice %3 {offsets = [0, 1], sizes = [4, 1], strides = [1, 1]} : vector<4x12xf32> to vector<4x1xf32>
      %25 = vector.shape_cast %24 : vector<4x1xf32> to vector<4xf32>
      %26 = vector.shape_cast %25 : vector<4xf32> to vector<4x1x1xf32>
      %27 = vector.broadcast %26 : vector<4x1x1xf32> to vector<4x16x128xf32>
      %28 = arith.mulf %1, %27 : vector<4x16x128xf32>
      %29 = arith.addf %23, %28 : vector<4x16x128xf32>
      %30 = vector.extract_strided_slice %3 {offsets = [0, 2], sizes = [4, 1], strides = [1, 1]} : vector<4x12xf32> to vector<4x1xf32>
      %31 = vector.shape_cast %30 : vector<4x1xf32> to vector<4xf32>
      %32 = vector.shape_cast %31 : vector<4xf32> to vector<4x1x1xf32>
      %33 = vector.broadcast %32 : vector<4x1x1xf32> to vector<4x16x128xf32>
      %34 = arith.mulf %18, %33 : vector<4x16x128xf32>
      %35 = arith.addf %29, %34 : vector<4x16x128xf32>
      %cst_11 = arith.constant 0.000000e+00 : f32
      %36 = vector.broadcast %cst_11 : f32 to vector<4x1x128xf32>
      %37 = vector.extract_strided_slice %35 {offsets = [0, 0, 0], sizes = [4, 15, 128], strides = [1, 1, 1]} : vector<4x16x128xf32> to vector<4x15x128xf32>
      %38 = tpu.concatenate %36, %37 in 1 : vector<4x1x128xf32>, vector<4x15x128xf32> -> vector<4x16x128xf32>
      %39 = vector.extract_strided_slice %3 {offsets = [0, 3], sizes = [4, 1], strides = [1, 1]} : vector<4x12xf32> to vector<4x1xf32>
      %40 = vector.shape_cast %39 : vector<4x1xf32> to vector<4xf32>
      %41 = vector.shape_cast %40 : vector<4xf32> to vector<4x1x1xf32>
      %42 = vector.broadcast %41 : vector<4x1x1xf32> to vector<4x16x128xf32>
      %43 = arith.mulf %15, %42 : vector<4x16x128xf32>
      %44 = vector.extract_strided_slice %3 {offsets = [0, 4], sizes = [4, 1], strides = [1, 1]} : vector<4x12xf32> to vector<4x1xf32>
      %45 = vector.shape_cast %44 : vector<4x1xf32> to vector<4xf32>
      %46 = vector.shape_cast %45 : vector<4xf32> to vector<4x1x1xf32>
      %47 = vector.broadcast %46 : vector<4x1x1xf32> to vector<4x16x128xf32>
      %48 = arith.mulf %1, %47 : vector<4x16x128xf32>
      %49 = arith.addf %43, %48 : vector<4x16x128xf32>
      %50 = vector.extract_strided_slice %3 {offsets = [0, 5], sizes = [4, 1], strides = [1, 1]} : vector<4x12xf32> to vector<4x1xf32>
      %51 = vector.shape_cast %50 : vector<4x1xf32> to vector<4xf32>
      %52 = vector.shape_cast %51 : vector<4xf32> to vector<4x1x1xf32>
      %53 = vector.broadcast %52 : vector<4x1x1xf32> to vector<4x16x128xf32>
      %54 = arith.mulf %18, %53 : vector<4x16x128xf32>
      %55 = arith.addf %49, %54 : vector<4x16x128xf32>
      %56 = arith.addf %38, %55 : vector<4x16x128xf32>
      %57 = vector.extract_strided_slice %3 {offsets = [0, 6], sizes = [4, 1], strides = [1, 1]} : vector<4x12xf32> to vector<4x1xf32>
      %58 = vector.shape_cast %57 : vector<4x1xf32> to vector<4xf32>
      %59 = vector.shape_cast %58 : vector<4xf32> to vector<4x1x1xf32>
      %60 = vector.broadcast %59 : vector<4x1x1xf32> to vector<4x16x128xf32>
      %61 = arith.mulf %15, %60 : vector<4x16x128xf32>
      %62 = vector.extract_strided_slice %3 {offsets = [0, 7], sizes = [4, 1], strides = [1, 1]} : vector<4x12xf32> to vector<4x1xf32>
      %63 = vector.shape_cast %62 : vector<4x1xf32> to vector<4xf32>
      %64 = vector.shape_cast %63 : vector<4xf32> to vector<4x1x1xf32>
      %65 = vector.broadcast %64 : vector<4x1x1xf32> to vector<4x16x128xf32>
      %66 = arith.mulf %1, %65 : vector<4x16x128xf32>
      %67 = arith.addf %61, %66 : vector<4x16x128xf32>
      %68 = vector.extract_strided_slice %3 {offsets = [0, 8], sizes = [4, 1], strides = [1, 1]} : vector<4x12xf32> to vector<4x1xf32>
      %69 = vector.shape_cast %68 : vector<4x1xf32> to vector<4xf32>
      %70 = vector.shape_cast %69 : vector<4xf32> to vector<4x1x1xf32>
      %71 = vector.broadcast %70 : vector<4x1x1xf32> to vector<4x16x128xf32>
      %72 = arith.mulf %18, %71 : vector<4x16x128xf32>
      %73 = arith.addf %67, %72 : vector<4x16x128xf32>
      %cst_12 = arith.constant 0.000000e+00 : f32
      %74 = vector.broadcast %cst_12 : f32 to vector<4x1x128xf32>
      %75 = vector.extract_strided_slice %73 {offsets = [0, 1, 0], sizes = [4, 15, 128], strides = [1, 1, 1]} : vector<4x16x128xf32> to vector<4x15x128xf32>
      %76 = tpu.concatenate %75, %74 in 1 : vector<4x15x128xf32>, vector<4x1x128xf32> -> vector<4x16x128xf32>
      %77 = arith.addf %56, %76 : vector<4x16x128xf32>
      %78 = vector.extract_strided_slice %3 {offsets = [0, 9], sizes = [4, 1], strides = [1, 1]} : vector<4x12xf32> to vector<4x1xf32>
      %79 = vector.shape_cast %78 : vector<4x1xf32> to vector<4xf32>
      %80 = vector.shape_cast %79 : vector<4xf32> to vector<4x1x1xf32>
      %81 = vector.broadcast %80 : vector<4x1x1xf32> to vector<4x16x128xf32>
      %82 = arith.addf %77, %81 : vector<4x16x128xf32>
      %c0_13 = arith.constant 0 : index
      %c0_14 = arith.constant 0 : index
      %c0_15 = arith.constant 0 : index
      %c0_16 = arith.constant 0 : index
      %83 = vector.load %arg5[%c0_13, %c0_14, %c0_15, %c0_16] : memref<1x4x16x128xf32, #tpu.memory_space<vmem>>, vector<1x4x16x128xf32>
      %84 = vector.shape_cast %83 : vector<1x4x16x128xf32> to vector<4x16x128xf32>
      %85 = vector.shape_cast %82 : vector<4x16x128xf32> to vector<1x4x16x128xf32>
      tpu.vector_store %arg5[%c0_13, %c0_14, %c0_15, %c0_16], %85 {strides = array<i32>} : memref<1x4x16x128xf32, #tpu.memory_space<vmem>>, vector<1x4x16x128xf32>,
    } else {
    }
    %c1_i32 = arith.constant 1 : i32
    %7 = arith.cmpi eq, %arg1, %c1_i32 : i32
    %8 = arith.extui %7 : i1 to i32
    %c0_i32_8 = arith.constant 0 : i32
    %9 = arith.cmpi ne, %8, %c0_i32_8 : i32
    scf.if %9 {
      %cst = arith.constant 0.000000e+00 : f32
      %13 = vector.broadcast %cst : f32 to vector<4x16x5xf32>
      %14 = vector.extract_strided_slice %1 {offsets = [0, 0, 0], sizes = [4, 16, 123], strides = [1, 1, 1]} : vector<4x16x128xf32> to vector<4x16x123xf32>
      %15 = tpu.concatenate %13, %14 in 2 : vector<4x16x5xf32>, vector<4x16x123xf32> -> vector<4x16x128xf32>
      %16 = vector.extract_strided_slice %3 {offsets = [0, 0], sizes = [4, 1], strides = [1, 1]} : vector<4x12xf32> to vector<4x1xf32>
      %17 = vector.shape_cast %16 : vector<4x1xf32> to vector<4xf32>
      %18 = vector.shape_cast %17 : vector<4xf32> to vector<4x1x1xf32>
      %19 = vector.broadcast %18 : vector<4x1x1xf32> to vector<4x16x128xf32>
      %20 = arith.mulf %15, %19 : vector<4x16x128xf32>
      %cst_10 = arith.constant 0.000000e+00 : f32
      %21 = vector.broadcast %cst_10 : f32 to vector<4x16x4xf32>
      %22 = vector.extract_strided_slice %1 {offsets = [0, 0, 0], sizes = [4, 16, 124], strides = [1, 1, 1]} : vector<4x16x128xf32> to vector<4x16x124xf32>
      %23 = tpu.concatenate %21, %22 in 2 : vector<4x16x4xf32>, vector<4x16x124xf32> -> vector<4x16x128xf32>
      %24 = vector.extract_strided_slice %3 {offsets = [0, 1], sizes = [4, 1], strides = [1, 1]} : vector<4x12xf32> to vector<4x1xf32>
      %25 = vector.shape_cast %24 : vector<4x1xf32> to vector<4xf32>
      %26 = vector.shape_cast %25 : vector<4xf32> to vector<4x1x1xf32>
      %27 = vector.broadcast %26 : vector<4x1x1xf32> to vector<4x16x128xf32>
      %28 = arith.mulf %23, %27 : vector<4x16x128xf32>
      %29 = arith.addf %20, %28 : vector<4x16x128xf32>
      %cst_11 = arith.constant 0.000000e+00 : f32
      %30 = vector.broadcast %cst_11 : f32 to vector<4x16x3xf32>
      %31 = vector.extract_strided_slice %1 {offsets = [0, 0, 0], sizes = [4, 16, 125], strides = [1, 1, 1]} : vector<4x16x128xf32> to vector<4x16x125xf32>
      %32 = tpu.concatenate %30, %31 in 2 : vector<4x16x3xf32>, vector<4x16x125xf32> -> vector<4x16x128xf32>
      %33 = vector.extract_strided_slice %3 {offsets = [0, 2], sizes = [4, 1], strides = [1, 1]} : vector<4x12xf32> to vector<4x1xf32>
      %34 = vector.shape_cast %33 : vector<4x1xf32> to vector<4xf32>
      %35 = vector.shape_cast %34 : vector<4xf32> to vector<4x1x1xf32>
      %36 = vector.broadcast %35 : vector<4x1x1xf32> to vector<4x16x128xf32>
      %37 = arith.mulf %32, %36 : vector<4x16x128xf32>
      %38 = arith.addf %29, %37 : vector<4x16x128xf32>
      %cst_12 = arith.constant 0.000000e+00 : f32
      %39 = vector.broadcast %cst_12 : f32 to vector<4x16x2xf32>
      %40 = vector.extract_strided_slice %1 {offsets = [0, 0, 0], sizes = [4, 16, 126], strides = [1, 1, 1]} : vector<4x16x128xf32> to vector<4x16x126xf32>
      %41 = tpu.concatenate %39, %40 in 2 : vector<4x16x2xf32>, vector<4x16x126xf32> -> vector<4x16x128xf32>
      %42 = vector.extract_strided_slice %3 {offsets = [0, 3], sizes = [4, 1], strides = [1, 1]} : vector<4x12xf32> to vector<4x1xf32>
      %43 = vector.shape_cast %42 : vector<4x1xf32> to vector<4xf32>
      %44 = vector.shape_cast %43 : vector<4xf32> to vector<4x1x1xf32>
      %45 = vector.broadcast %44 : vector<4x1x1xf32> to vector<4x16x128xf32>
      %46 = arith.mulf %41, %45 : vector<4x16x128xf32>
      %47 = arith.addf %38, %46 : vector<4x16x128xf32>
      %cst_13 = arith.constant 0.000000e+00 : f32
      %48 = vector.broadcast %cst_13 : f32 to vector<4x16x1xf32>
      %49 = vector.extract_strided_slice %1 {offsets = [0, 0, 0], sizes = [4, 16, 127], strides = [1, 1, 1]} : vector<4x16x128xf32> to vector<4x16x127xf32>
      %50 = tpu.concatenate %48, %49 in 2 : vector<4x16x1xf32>, vector<4x16x127xf32> -> vector<4x16x128xf32>
      %51 = vector.extract_strided_slice %3 {offsets = [0, 4], sizes = [4, 1], strides = [1, 1]} : vector<4x12xf32> to vector<4x1xf32>
      %52 = vector.shape_cast %51 : vector<4x1xf32> to vector<4xf32>
      %53 = vector.shape_cast %52 : vector<4xf32> to vector<4x1x1xf32>
      %54 = vector.broadcast %53 : vector<4x1x1xf32> to vector<4x16x128xf32>
      %55 = arith.mulf %50, %54 : vector<4x16x128xf32>
      %56 = arith.addf %47, %55 : vector<4x16x128xf32>
      %57 = vector.extract_strided_slice %3 {offsets = [0, 5], sizes = [4, 1], strides = [1, 1]} : vector<4x12xf32> to vector<4x1xf32>
      %58 = vector.shape_cast %57 : vector<4x1xf32> to vector<4xf32>
      %59 = vector.shape_cast %58 : vector<4xf32> to vector<4x1x1xf32>
      %60 = vector.broadcast %59 : vector<4x1x1xf32> to vector<4x16x128xf32>
      %61 = arith.mulf %1, %60 : vector<4x16x128xf32>
      %62 = arith.addf %56, %61 : vector<4x16x128xf32>
      %cst_14 = arith.constant 0.000000e+00 : f32
      %63 = vector.broadcast %cst_14 : f32 to vector<4x16x1xf32>
      %64 = vector.extract_strided_slice %1 {offsets = [0, 0, 1], sizes = [4, 16, 127], strides = [1, 1, 1]} : vector<4x16x128xf32> to vector<4x16x127xf32>
      %65 = tpu.concatenate %64, %63 in 2 : vector<4x16x127xf32>, vector<4x16x1xf32> -> vector<4x16x128xf32>
      %66 = vector.extract_strided_slice %3 {offsets = [0, 6], sizes = [4, 1], strides = [1, 1]} : vector<4x12xf32> to vector<4x1xf32>
      %67 = vector.shape_cast %66 : vector<4x1xf32> to vector<4xf32>
      %68 = vector.shape_cast %67 : vector<4xf32> to vector<4x1x1xf32>
      %69 = vector.broadcast %68 : vector<4x1x1xf32> to vector<4x16x128xf32>
      %70 = arith.mulf %65, %69 : vector<4x16x128xf32>
      %71 = arith.addf %62, %70 : vector<4x16x128xf32>
      %cst_15 = arith.constant 0.000000e+00 : f32
      %72 = vector.broadcast %cst_15 : f32 to vector<4x16x2xf32>
      %73 = vector.extract_strided_slice %1 {offsets = [0, 0, 2], sizes = [4, 16, 126], strides = [1, 1, 1]} : vector<4x16x128xf32> to vector<4x16x126xf32>
      %74 = tpu.concatenate %73, %72 in 2 : vector<4x16x126xf32>, vector<4x16x2xf32> -> vector<4x16x128xf32>
      %75 = vector.extract_strided_slice %3 {offsets = [0, 7], sizes = [4, 1], strides = [1, 1]} : vector<4x12xf32> to vector<4x1xf32>
      %76 = vector.shape_cast %75 : vector<4x1xf32> to vector<4xf32>
      %77 = vector.shape_cast %76 : vector<4xf32> to vector<4x1x1xf32>
      %78 = vector.broadcast %77 : vector<4x1x1xf32> to vector<4x16x128xf32>
      %79 = arith.mulf %74, %78 : vector<4x16x128xf32>
      %80 = arith.addf %71, %79 : vector<4x16x128xf32>
      %cst_16 = arith.constant 0.000000e+00 : f32
      %81 = vector.broadcast %cst_16 : f32 to vector<4x16x3xf32>
      %82 = vector.extract_strided_slice %1 {offsets = [0, 0, 3], sizes = [4, 16, 125], strides = [1, 1, 1]} : vector<4x16x128xf32> to vector<4x16x125xf32>
      %83 = tpu.concatenate %82, %81 in 2 : vector<4x16x125xf32>, vector<4x16x3xf32> -> vector<4x16x128xf32>
      %84 = vector.extract_strided_slice %3 {offsets = [0, 8], sizes = [4, 1], strides = [1, 1]} : vector<4x12xf32> to vector<4x1xf32>
      %85 = vector.shape_cast %84 : vector<4x1xf32> to vector<4xf32>
      %86 = vector.shape_cast %85 : vector<4xf32> to vector<4x1x1xf32>
      %87 = vector.broadcast %86 : vector<4x1x1xf32> to vector<4x16x128xf32>
      %88 = arith.mulf %83, %87 : vector<4x16x128xf32>
      %89 = arith.addf %80, %88 : vector<4x16x128xf32>
      %cst_17 = arith.constant 0.000000e+00 : f32
      %90 = vector.broadcast %cst_17 : f32 to vector<4x16x4xf32>
      %91 = vector.extract_strided_slice %1 {offsets = [0, 0, 4], sizes = [4, 16, 124], strides = [1, 1, 1]} : vector<4x16x128xf32> to vector<4x16x124xf32>
      %92 = tpu.concatenate %91, %90 in 2 : vector<4x16x124xf32>, vector<4x16x4xf32> -> vector<4x16x128xf32>
      %93 = vector.extract_strided_slice %3 {offsets = [0, 9], sizes = [4, 1], strides = [1, 1]} : vector<4x12xf32> to vector<4x1xf32>
      %94 = vector.shape_cast %93 : vector<4x1xf32> to vector<4xf32>
      %95 = vector.shape_cast %94 : vector<4xf32> to vector<4x1x1xf32>
      %96 = vector.broadcast %95 : vector<4x1x1xf32> to vector<4x16x128xf32>
      %97 = arith.mulf %92, %96 : vector<4x16x128xf32>
      %98 = arith.addf %89, %97 : vector<4x16x128xf32>
      %cst_18 = arith.constant 0.000000e+00 : f32
      %99 = vector.broadcast %cst_18 : f32 to vector<4x16x5xf32>
      %100 = vector.extract_strided_slice %1 {offsets = [0, 0, 5], sizes = [4, 16, 123], strides = [1, 1, 1]} : vector<4x16x128xf32> to vector<4x16x123xf32>
      %101 = tpu.concatenate %100, %99 in 2 : vector<4x16x123xf32>, vector<4x16x5xf32> -> vector<4x16x128xf32>
      %102 = vector.extract_strided_slice %3 {offsets = [0, 10], sizes = [4, 1], strides = [1, 1]} : vector<4x12xf32> to vector<4x1xf32>
      %103 = vector.shape_cast %102 : vector<4x1xf32> to vector<4xf32>
      %104 = vector.shape_cast %103 : vector<4xf32> to vector<4x1x1xf32>
      %105 = vector.broadcast %104 : vector<4x1x1xf32> to vector<4x16x128xf32>
      %106 = arith.mulf %101, %105 : vector<4x16x128xf32>
      %107 = arith.addf %98, %106 : vector<4x16x128xf32>
      %108 = vector.extract_strided_slice %3 {offsets = [0, 11], sizes = [4, 1], strides = [1, 1]} : vector<4x12xf32> to vector<4x1xf32>
      %109 = vector.shape_cast %108 : vector<4x1xf32> to vector<4xf32>
      %110 = vector.shape_cast %109 : vector<4xf32> to vector<4x1x1xf32>
      %111 = vector.broadcast %110 : vector<4x1x1xf32> to vector<4x16x128xf32>
      %112 = arith.addf %107, %111 : vector<4x16x128xf32>
      %c0_19 = arith.constant 0 : index
      %c0_20 = arith.constant 0 : index
      %c0_21 = arith.constant 0 : index
      %c0_22 = arith.constant 0 : index
      %113 = vector.load %arg5[%c0_19, %c0_20, %c0_21, %c0_22] : memref<1x4x16x128xf32, #tpu.memory_space<vmem>>, vector<1x4x16x128xf32>
      %114 = vector.shape_cast %113 : vector<1x4x16x128xf32> to vector<4x16x128xf32>
      %115 = vector.shape_cast %112 : vector<4x16x128xf32> to vector<1x4x16x128xf32>
      tpu.vector_store %arg5[%c0_19, %c0_20, %c0_21, %c0_22], %115 {strides = array<i32>} : memref<1x4x16x128xf32, #tpu.memory_space<vmem>>, vector<1x4x16x128xf32>,
    } else {
    }
    %c2_i32 = arith.constant 2 : i32
    %10 = arith.cmpi eq, %arg1, %c2_i32 : i32
    %11 = arith.extui %10 : i1 to i32
    %c0_i32_9 = arith.constant 0 : i32
    %12 = arith.cmpi ne, %11, %c0_i32_9 : i32
    scf.if %12 {
      %cst = arith.constant 0.000000e+00 : f32
      %13 = vector.broadcast %cst : f32 to vector<4x5x128xf32>
      %14 = vector.extract_strided_slice %1 {offsets = [0, 0, 0], sizes = [4, 11, 128], strides = [1, 1, 1]} : vector<4x16x128xf32> to vector<4x11x128xf32>
      %15 = tpu.concatenate %13, %14 in 1 : vector<4x5x128xf32>, vector<4x11x128xf32> -> vector<4x16x128xf32>
      %16 = vector.extract_strided_slice %3 {offsets = [0, 0], sizes = [4, 1], strides = [1, 1]} : vector<4x12xf32> to vector<4x1xf32>
      %17 = vector.shape_cast %16 : vector<4x1xf32> to vector<4xf32>
      %18 = vector.shape_cast %17 : vector<4xf32> to vector<4x1x1xf32>
      %19 = vector.broadcast %18 : vector<4x1x1xf32> to vector<4x16x128xf32>
      %20 = arith.mulf %15, %19 : vector<4x16x128xf32>
      %cst_10 = arith.constant 0.000000e+00 : f32
      %21 = vector.broadcast %cst_10 : f32 to vector<4x4x128xf32>
      %22 = vector.extract_strided_slice %1 {offsets = [0, 0, 0], sizes = [4, 12, 128], strides = [1, 1, 1]} : vector<4x16x128xf32> to vector<4x12x128xf32>
      %23 = tpu.concatenate %21, %22 in 1 : vector<4x4x128xf32>, vector<4x12x128xf32> -> vector<4x16x128xf32>
      %24 = vector.extract_strided_slice %3 {offsets = [0, 1], sizes = [4, 1], strides = [1, 1]} : vector<4x12xf32> to vector<4x1xf32>
      %25 = vector.shape_cast %24 : vector<4x1xf32> to vector<4xf32>
      %26 = vector.shape_cast %25 : vector<4xf32> to vector<4x1x1xf32>
      %27 = vector.broadcast %26 : vector<4x1x1xf32> to vector<4x16x128xf32>
      %28 = arith.mulf %23, %27 : vector<4x16x128xf32>
      %29 = arith.addf %20, %28 : vector<4x16x128xf32>
      %cst_11 = arith.constant 0.000000e+00 : f32
      %30 = vector.broadcast %cst_11 : f32 to vector<4x3x128xf32>
      %31 = vector.extract_strided_slice %1 {offsets = [0, 0, 0], sizes = [4, 13, 128], strides = [1, 1, 1]} : vector<4x16x128xf32> to vector<4x13x128xf32>
      %32 = tpu.concatenate %30, %31 in 1 : vector<4x3x128xf32>, vector<4x13x128xf32> -> vector<4x16x128xf32>
      %33 = vector.extract_strided_slice %3 {offsets = [0, 2], sizes = [4, 1], strides = [1, 1]} : vector<4x12xf32> to vector<4x1xf32>
      %34 = vector.shape_cast %33 : vector<4x1xf32> to vector<4xf32>
      %35 = vector.shape_cast %34 : vector<4xf32> to vector<4x1x1xf32>
      %36 = vector.broadcast %35 : vector<4x1x1xf32> to vector<4x16x128xf32>
      %37 = arith.mulf %32, %36 : vector<4x16x128xf32>
      %38 = arith.addf %29, %37 : vector<4x16x128xf32>
      %cst_12 = arith.constant 0.000000e+00 : f32
      %39 = vector.broadcast %cst_12 : f32 to vector<4x2x128xf32>
      %40 = vector.extract_strided_slice %1 {offsets = [0, 0, 0], sizes = [4, 14, 128], strides = [1, 1, 1]} : vector<4x16x128xf32> to vector<4x14x128xf32>
      %41 = tpu.concatenate %39, %40 in 1 : vector<4x2x128xf32>, vector<4x14x128xf32> -> vector<4x16x128xf32>
      %42 = vector.extract_strided_slice %3 {offsets = [0, 3], sizes = [4, 1], strides = [1, 1]} : vector<4x12xf32> to vector<4x1xf32>
      %43 = vector.shape_cast %42 : vector<4x1xf32> to vector<4xf32>
      %44 = vector.shape_cast %43 : vector<4xf32> to vector<4x1x1xf32>
      %45 = vector.broadcast %44 : vector<4x1x1xf32> to vector<4x16x128xf32>
      %46 = arith.mulf %41, %45 : vector<4x16x128xf32>
      %47 = arith.addf %38, %46 : vector<4x16x128xf32>
      %cst_13 = arith.constant 0.000000e+00 : f32
      %48 = vector.broadcast %cst_13 : f32 to vector<4x1x128xf32>
      %49 = vector.extract_strided_slice %1 {offsets = [0, 0, 0], sizes = [4, 15, 128], strides = [1, 1, 1]} : vector<4x16x128xf32> to vector<4x15x128xf32>
      %50 = tpu.concatenate %48, %49 in 1 : vector<4x1x128xf32>, vector<4x15x128xf32> -> vector<4x16x128xf32>
      %51 = vector.extract_strided_slice %3 {offsets = [0, 4], sizes = [4, 1], strides = [1, 1]} : vector<4x12xf32> to vector<4x1xf32>
      %52 = vector.shape_cast %51 : vector<4x1xf32> to vector<4xf32>
      %53 = vector.shape_cast %52 : vector<4xf32> to vector<4x1x1xf32>
      %54 = vector.broadcast %53 : vector<4x1x1xf32> to vector<4x16x128xf32>
      %55 = arith.mulf %50, %54 : vector<4x16x128xf32>
      %56 = arith.addf %47, %55 : vector<4x16x128xf32>
      %57 = vector.extract_strided_slice %3 {offsets = [0, 5], sizes = [4, 1], strides = [1, 1]} : vector<4x12xf32> to vector<4x1xf32>
      %58 = vector.shape_cast %57 : vector<4x1xf32> to vector<4xf32>
      %59 = vector.shape_cast %58 : vector<4xf32> to vector<4x1x1xf32>
      %60 = vector.broadcast %59 : vector<4x1x1xf32> to vector<4x16x128xf32>
      %61 = arith.mulf %1, %60 : vector<4x16x128xf32>
      %62 = arith.addf %56, %61 : vector<4x16x128xf32>
      %cst_14 = arith.constant 0.000000e+00 : f32
      %63 = vector.broadcast %cst_14 : f32 to vector<4x1x128xf32>
      %64 = vector.extract_strided_slice %1 {offsets = [0, 1, 0], sizes = [4, 15, 128], strides = [1, 1, 1]} : vector<4x16x128xf32> to vector<4x15x128xf32>
      %65 = tpu.concatenate %64, %63 in 1 : vector<4x15x128xf32>, vector<4x1x128xf32> -> vector<4x16x128xf32>
      %66 = vector.extract_strided_slice %3 {offsets = [0, 6], sizes = [4, 1], strides = [1, 1]} : vector<4x12xf32> to vector<4x1xf32>
      %67 = vector.shape_cast %66 : vector<4x1xf32> to vector<4xf32>
      %68 = vector.shape_cast %67 : vector<4xf32> to vector<4x1x1xf32>
      %69 = vector.broadcast %68 : vector<4x1x1xf32> to vector<4x16x128xf32>
      %70 = arith.mulf %65, %69 : vector<4x16x128xf32>
      %71 = arith.addf %62, %70 : vector<4x16x128xf32>
      %cst_15 = arith.constant 0.000000e+00 : f32
      %72 = vector.broadcast %cst_15 : f32 to vector<4x2x128xf32>
      %73 = vector.extract_strided_slice %1 {offsets = [0, 2, 0], sizes = [4, 14, 128], strides = [1, 1, 1]} : vector<4x16x128xf32> to vector<4x14x128xf32>
      %74 = tpu.concatenate %73, %72 in 1 : vector<4x14x128xf32>, vector<4x2x128xf32> -> vector<4x16x128xf32>
      %75 = vector.extract_strided_slice %3 {offsets = [0, 7], sizes = [4, 1], strides = [1, 1]} : vector<4x12xf32> to vector<4x1xf32>
      %76 = vector.shape_cast %75 : vector<4x1xf32> to vector<4xf32>
      %77 = vector.shape_cast %76 : vector<4xf32> to vector<4x1x1xf32>
      %78 = vector.broadcast %77 : vector<4x1x1xf32> to vector<4x16x128xf32>
      %79 = arith.mulf %74, %78 : vector<4x16x128xf32>
      %80 = arith.addf %71, %79 : vector<4x16x128xf32>
      %cst_16 = arith.constant 0.000000e+00 : f32
      %81 = vector.broadcast %cst_16 : f32 to vector<4x3x128xf32>
      %82 = vector.extract_strided_slice %1 {offsets = [0, 3, 0], sizes = [4, 13, 128], strides = [1, 1, 1]} : vector<4x16x128xf32> to vector<4x13x128xf32>
      %83 = tpu.concatenate %82, %81 in 1 : vector<4x13x128xf32>, vector<4x3x128xf32> -> vector<4x16x128xf32>
      %84 = vector.extract_strided_slice %3 {offsets = [0, 8], sizes = [4, 1], strides = [1, 1]} : vector<4x12xf32> to vector<4x1xf32>
      %85 = vector.shape_cast %84 : vector<4x1xf32> to vector<4xf32>
      %86 = vector.shape_cast %85 : vector<4xf32> to vector<4x1x1xf32>
      %87 = vector.broadcast %86 : vector<4x1x1xf32> to vector<4x16x128xf32>
      %88 = arith.mulf %83, %87 : vector<4x16x128xf32>
      %89 = arith.addf %80, %88 : vector<4x16x128xf32>
      %cst_17 = arith.constant 0.000000e+00 : f32
      %90 = vector.broadcast %cst_17 : f32 to vector<4x4x128xf32>
      %91 = vector.extract_strided_slice %1 {offsets = [0, 4, 0], sizes = [4, 12, 128], strides = [1, 1, 1]} : vector<4x16x128xf32> to vector<4x12x128xf32>
      %92 = tpu.concatenate %91, %90 in 1 : vector<4x12x128xf32>, vector<4x4x128xf32> -> vector<4x16x128xf32>
      %93 = vector.extract_strided_slice %3 {offsets = [0, 9], sizes = [4, 1], strides = [1, 1]} : vector<4x12xf32> to vector<4x1xf32>
      %94 = vector.shape_cast %93 : vector<4x1xf32> to vector<4xf32>
      %95 = vector.shape_cast %94 : vector<4xf32> to vector<4x1x1xf32>
      %96 = vector.broadcast %95 : vector<4x1x1xf32> to vector<4x16x128xf32>
      %97 = arith.mulf %92, %96 : vector<4x16x128xf32>
      %98 = arith.addf %89, %97 : vector<4x16x128xf32>
      %cst_18 = arith.constant 0.000000e+00 : f32
      %99 = vector.broadcast %cst_18 : f32 to vector<4x5x128xf32>
      %100 = vector.extract_strided_slice %1 {offsets = [0, 5, 0], sizes = [4, 11, 128], strides = [1, 1, 1]} : vector<4x16x128xf32> to vector<4x11x128xf32>
      %101 = tpu.concatenate %100, %99 in 1 : vector<4x11x128xf32>, vector<4x5x128xf32> -> vector<4x16x128xf32>
      %102 = vector.extract_strided_slice %3 {offsets = [0, 10], sizes = [4, 1], strides = [1, 1]} : vector<4x12xf32> to vector<4x1xf32>
      %103 = vector.shape_cast %102 : vector<4x1xf32> to vector<4xf32>
      %104 = vector.shape_cast %103 : vector<4xf32> to vector<4x1x1xf32>
      %105 = vector.broadcast %104 : vector<4x1x1xf32> to vector<4x16x128xf32>
      %106 = arith.mulf %101, %105 : vector<4x16x128xf32>
      %107 = arith.addf %98, %106 : vector<4x16x128xf32>
      %108 = vector.extract_strided_slice %3 {offsets = [0, 11], sizes = [4, 1], strides = [1, 1]} : vector<4x12xf32> to vector<4x1xf32>
      %109 = vector.shape_cast %108 : vector<4x1xf32> to vector<4xf32>
      %110 = vector.shape_cast %109 : vector<4xf32> to vector<4x1x1xf32>
      %111 = vector.broadcast %110 : vector<4x1x1xf32> to vector<4x16x128xf32>
      %112 = arith.addf %107, %111 : vector<4x16x128xf32>
      %c0_19 = arith.constant 0 : index
      %c0_20 = arith.constant 0 : index
      %c0_21 = arith.constant 0 : index
      %c0_22 = arith.constant 0 : index
      %113 = vector.load %arg5[%c0_19, %c0_20, %c0_21, %c0_22] : memref<1x4x16x128xf32, #tpu.memory_space<vmem>>, vector<1x4x16x128xf32>
      %114 = vector.shape_cast %113 : vector<1x4x16x128xf32> to vector<4x16x128xf32>
      %115 = vector.shape_cast %112 : vector<4x16x128xf32> to vector<1x4x16x128xf32>
      tpu.vector_store %arg5[%c0_19, %c0_20, %c0_21, %c0_22], %115 {strides = array<i32>} : memref<1x4x16x128xf32, #tpu.memory_space<vmem>>, vector<1x4x16x128xf32>,
    } else {
    }
    return
  }
  func.func @transform_0(%arg0: i32, %arg1: i32, %arg2: i32) -> (i32, i32, i32, i32) {
    %c1_i32 = arith.constant 1 : i32
    %0 = arith.muli %arg1, %c1_i32 : i32
    %c5_i32 = arith.constant 5 : i32
    %1 = arith.addi %c5_i32, %0 : i32
    %2 = arith.addi %1, %arg2 : i32
    %c0_i32 = arith.constant 0 : i32
    %c0_i32_0 = arith.constant 0 : i32
    %c0_i32_1 = arith.constant 0 : i32
    return %arg0, %2, %c0_i32, %c0_i32_0 : i32, i32, i32, i32
  }
  func.func @transform_1(%arg0: i32, %arg1: i32, %arg2: i32) -> (i32, i32, i32, i32) {
    %c0_i32 = arith.constant 0 : i32
    %c0_i32_0 = arith.constant 0 : i32
    %c0_i32_1 = arith.constant 0 : i32
    return %arg1, %arg2, %c0_i32, %c0_i32_0 : i32, i32, i32, i32
  }
  func.func @transform_2(%arg0: i32, %arg1: i32, %arg2: i32) -> (i32, i32, i32, i32) {
    %c1_i32 = arith.constant 1 : i32
    %0 = arith.muli %arg1, %c1_i32 : i32
    %c5_i32 = arith.constant 5 : i32
    %1 = arith.addi %c5_i32, %0 : i32
    %2 = arith.addi %1, %arg2 : i32
    %c0_i32 = arith.constant 0 : i32
    %c0_i32_0 = arith.constant 0 : i32
    %c0_i32_1 = arith.constant 0 : i32
    return %arg0, %2, %c0_i32, %c0_i32_0 : i32, i32, i32, i32
  }
}

</mosaic_0001>

<llo_original>
// kernel: _lambda_.1
$region0: #{_lambda_.1}
  #allocation0 [shape = 'u32[]', space=smem, size = 0x4, offset = 0x4, fixed_abs, tag = 'smem constant byte address 0x4 - core index']
  #allocation1 [shape = 'u32[144,128]{1,0:T(1,128)}', space=vmem, size = 0x12000, scoped, tag = 'internal scratch']
  %s0 = inlined_call_operand.hbm [shape: f32[2,32,16,128], index: 0, kind: input, shape index: {}, may-alias: {0,2}]
  %s1 = inlined_call_operand.vmem [shape: f32[3,1,4,12], index: 1, kind: input, shape index: {}]
  %s2 = inlined_call_operand.hbm [shape: f32[2,32,16,128], index: 2, kind: output, shape index: {}, may-alias: {0,2}]
  %s3 = sld [smem:[#allocation0]]
  $region57: #{_lambda_.1} parent=0
    _
  %s5 = ssub.s32 1, %s3
  %s6 = scalar_select 0, %s5, %s3
  $region1: #{_lambda_.1} parent=0
    #allocation2 [shape = 'u8[65536]{0}', space=vmem, size = 0x10000, scoped, tag = 'input window, operand 0']
    #allocation3 [shape = 's32[2]{0}', space=sflag, size = 0x8, scoped, tag = 'scoped memory for _lambda_.1']
    #allocation4 [shape = 's32[2]{0}', space=sflag, size = 0x8, scoped, tag = 'scoped memory for _lambda_.1']
    #allocation5 [shape = 'u8[65536]{0}', space=vmem, size = 0x10000, scoped, tag = 'output window, operand 0']
    %7 = vsyncpa [#allocation3], 0
    %s8 = scalar_lea.sflag [#allocation3], 1
    %9 = vsyncpa %s8, 0
    %10 = vsyncpa [#allocation4], 0
    %s11 = scalar_lea.sflag [#allocation4], 1
    %12 = vsyncpa %s11, 0
    loop: start=0, step=1, limit=8
    $region2: #{_lambda_.1} parent=1 // loop_pre_header
      _
    $region3: #{_lambda_.1} parent=1 // loop_header
      %s14 = sphi 0, %s18
      %p15 = scmp.ge.s32.totalorder %s14, 8
      %s21 = sphi 0, %s40
      %s22 = sphi 0, %s36
      %s23 = sphi 0, %s32
      %s24 = sphi 0, %s21
      %s25 = sphi 0, %s22
      %s26 = sphi 0, %s23
      %s27 = sphi 0, %s24
      %s28 = sphi 0, %s25
      %s29 = sphi 0, %s26
      %s49 = sphi 0, %s51
      %s52 = sphi 0, %s49
      %s53 = sphi 0, %s52
      %s69 = sphi 0, %s53
      %s77 = sphi 0, %s79
      %s80 = sphi 0, %s77
      %s81 = sphi 0, %s80
      %s97 = sphi 0, %s81
      %s109 = sphi 0, %s111
      %s112 = sphi 0, %s109
      %s113 = sphi 0, %s112
      %s129 = sphi 0, %s113
    $region4: #{_lambda_.1} parent=1 // loop_header_branch
      %17 = sbr.rel (%p15) target = $region8
    $region5: #{_lambda_.1} parent=1 // loop_body
      %s19 = ssub.s32 %s14, 1
      %s20 = ssub.s32 %s14, 2
      %s30 = sadd.s32 1, %s23
      %p31 = scmp.ge.s32.totalorder %s30, 1
      %s32 = scalar_select %p31, 0, %s30
      %s33 = sadd.s32 1, %s22
      %s34 = scalar_select %p31, %s33, %s22
      %p35 = scmp.ge.s32.totalorder %s34, 3
      %s36 = scalar_select %p35, 0, %s34
      %s37 = sadd.s32 1, %s21
      %s38 = scalar_select %p35, %s37, %s21
      %p39 = scmp.ge.s32.totalorder %s38, 2
      %s40 = scalar_select %p39, 0, %s38
      %s41 = sadd.s32 %s22, 5
      %s42 = sadd.s32 %s41, %s23
      %s43 = sadd.s32 %s36, 5
      %s44 = sadd.s32 %s43, %s32
      %s45 = ssub.s32 %s21, %s40
      %s46 = ssub.s32 %s42, %s44
      %s47 = sor.u32 %s45, %s46
      %p48 = scmp.eq.s32.totalorder %s47, 0
      %s50 = sadd.s32 %s49, 1
      %s51 = scalar_select %p48, %s49, %s50
      %p54 = pneg %p48
      %p55 = scmp.eq.s32.totalorder %s14, 5
      %p56 = por %p54, %p55
      %p57 = scmp.ne.s32.totalorder %s49, %s52
      %p58 = scmp.eq.s32.totalorder %s14, 0
      %p59 = por %p57, %p58
      %p60 = scmp.ne.s32.totalorder %s49, %s52
      %p61 = scmp.eq.s32.totalorder %s19, 5
      %p62 = por %p60, %p61
      %p63 = scmp.ne.s32.totalorder %s52, %s53
      %p64 = scmp.eq.s32.totalorder %s19, 0
      %p65 = por %p63, %p64
      %p66 = scmp.ne.s32.totalorder %s52, %s53
      %p67 = scmp.eq.s32.totalorder %s20, 5
      %p68 = por %p66, %p67
      %p70 = scmp.ne.s32.totalorder %s53, %s69
      %p71 = scmp.eq.s32.totalorder %s20, 0
      %p72 = por %p70, %p71
      %s73 = ssub.s32 %s22, %s36
      %s74 = ssub.s32 %s23, %s32
      %s75 = sor.u32 %s73, %s74
      %p76 = scmp.eq.s32.totalorder %s75, 0
      %s78 = sadd.s32 %s77, 1
      %s79 = scalar_select %p76, %s77, %s78
      %p82 = pneg %p76
      %p83 = scmp.eq.s32.totalorder %s14, 5
      %p84 = por %p82, %p83
      %p85 = scmp.ne.s32.totalorder %s77, %s80
      %p86 = scmp.eq.s32.totalorder %s14, 0
      %p87 = por %p85, %p86
      %p88 = scmp.ne.s32.totalorder %s77, %s80
      %p89 = scmp.eq.s32.totalorder %s19, 5
      %p90 = por %p88, %p89
      %p91 = scmp.ne.s32.totalorder %s80, %s81
      %p92 = scmp.eq.s32.totalorder %s19, 0
      %p93 = por %p91, %p92
      %p94 = scmp.ne.s32.totalorder %s80, %s81
      %p95 = scmp.eq.s32.totalorder %s20, 5
      %p96 = por %p94, %p95
      %p98 = scmp.ne.s32.totalorder %s81, %s97
      %p99 = scmp.eq.s32.totalorder %s20, 0
      %p100 = por %p98, %p99
      %s101 = sadd.s32 %s22, 5
      %s102 = sadd.s32 %s101, %s23
      %s103 = sadd.s32 %s36, 5
      %s104 = sadd.s32 %s103, %s32
      %s105 = ssub.s32 %s21, %s40
      %s106 = ssub.s32 %s102, %s104
      %s107 = sor.u32 %s105, %s106
      %p108 = scmp.eq.s32.totalorder %s107, 0
      %s110 = sadd.s32 %s109, 1
      %s111 = scalar_select %p108, %s109, %s110
      %p114 = pneg %p108
      %p115 = scmp.eq.s32.totalorder %s14, 5
      %p116 = por %p114, %p115
      %p117 = scmp.ne.s32.totalorder %s109, %s112
      %p118 = scmp.eq.s32.totalorder %s14, 0
      %p119 = por %p117, %p118
      %p120 = scmp.ne.s32.totalorder %s109, %s112
      %p121 = scmp.eq.s32.totalorder %s19, 5
      %p122 = por %p120, %p121
      %p123 = scmp.ne.s32.totalorder %s112, %s113
      %p124 = scmp.eq.s32.totalorder %s19, 0
      %p125 = por %p123, %p124
      %p126 = scmp.ne.s32.totalorder %s112, %s113
      %p127 = scmp.eq.s32.totalorder %s20, 5
      %p128 = por %p126, %p127
      %p130 = scmp.ne.s32.totalorder %s113, %s129
      %p131 = scmp.eq.s32.totalorder %s20, 0
      %p132 = por %p130, %p131
      %p133 = scmp.le.s32.totalorder 1, %s14
      %p134 = scmp.lt.s32.totalorder %s14, 7
      %p135 = pnand %p133, %p134
      %p136 = pneg %p135
      // Predicated region
      $region9: #{_lambda_.1} parent=5 // pred_check
        _
      $region10: #{_lambda_.1} parent=5 // pred_check_branch
        %138 = sbr.rel (%p135) target = $region12
      $region11: #{_lambda_.1} parent=5 // pred_region
        %s139 = ssub.s32 %s14, 1
      $region12: #{_lambda_.1} parent=5 // pred_fallthru
        _
      %p140 = scmp.lt.s32.totalorder %s14, 6
      // Predicated region
      $region13: #{_lambda_.1} parent=5 // pred_check
        %p141 = pneg %p140
      $region14: #{_lambda_.1} parent=5 // pred_check_branch
        %143 = sbr.rel (%p141) target = $region16
      $region15: #{_lambda_.1} parent=5 // pred_region
        // Predicated region
        $region17: #{_lambda_.1} parent=15 // pred_check
          %p144 = pneg %p59
        $region18: #{_lambda_.1} parent=15 // pred_check_branch
          %146 = sbr.rel (%p144) target = $region20
        $region19: #{_lambda_.1} parent=15 // pred_region
          %s147 = sand.u32 %s49, 1
          %s148 = scalar_lea.sflag [#allocation3], %s147
          %s149 = sand.u32 %s49, 1
          %s150 = smul.addr %s149, 64
          %s151 = scalar_lea.vmem [#allocation2], %s150
          %s152 = sadd.s32 %s22, 5
          %s153 = sadd.s32 %s152, %s23
          %s154 = smul.u32 4, %s153
          %s156 = ssub.s32 1024, 1024
          %157 = vsyncadd %s148, %s156
          %s158 = smul.addr %s154, 2
          %s159 = smul.addr %s21, 64
          %s160 = sadd.s32 %s158, %s159
          %s161 = smul.addr %s160, 128
          %s162 = scalar_lea.hbm %s0, %s161
          %s163 = sshll.u32 %s151, 4
          %s164 = int_to_ptr.vmem [resolvable:$true] %s163
          %169 = dma.hbm_to_vmem [thread:$0]  %s162, 1024, %s164, %s148, 128, 128, 8
        $region20: #{_lambda_.1} parent=15 // pred_fallthru
          _
        // Predicated region
        $region21: #{_lambda_.1} parent=15 // pred_check
          %p170 = pneg %p87
        $region22: #{_lambda_.1} parent=15 // pred_check_branch
          %172 = sbr.rel (%p170) target = $region24
        $region23: #{_lambda_.1} parent=15 // pred_region
          %p173 = scmp.lt.s32.totalorder %s22, 2
          %s174 = scalar_select %p173, %s22, 2
          %p175 = scmp.lt.s32.totalorder %s23, 0
          %s176 = scalar_select %p175, %s23, 0
          %s177 = sadd.s32 %s176, %s174
          %s178 = smul.addr %s177, 4
          %s179 = scalar_lea.vmem %s1, %s178
        $region24: #{_lambda_.1} parent=15 // pred_fallthru
          _
      $region16: #{_lambda_.1} parent=5 // pred_fallthru
        _
      %p180 = scmp.le.s32.totalorder 1, %s14
      %p181 = scmp.lt.s32.totalorder %s14, 7
      %p182 = pnand %p180, %p181
      %p183 = pneg %p182
      // Predicated region
      $region25: #{_lambda_.1} parent=5 // pred_check
        _
      $region26: #{_lambda_.1} parent=5 // pred_check_branch
        %185 = sbr.rel (%p182) target = $region28
      $region27: #{_lambda_.1} parent=5 // pred_region
        %s186 = ssub.s32 %s14, 1
        %s187 = sand.u32 %s52, 1
        %s188 = scalar_lea.sflag [#allocation3], %s187
        %s189 = sand.u32 %s52, 1
        %s190 = smul.addr %s189, 64
        %s191 = scalar_lea.vmem [#allocation2], %s190
        // Predicated region
        $region29: #{_lambda_.1} parent=27 // pred_check
          %p192 = pneg %p65
        $region30: #{_lambda_.1} parent=27 // pred_check_branch
          %194 = sbr.rel (%p192) target = $region32
        $region31: #{_lambda_.1} parent=27 // pred_region
          %195 = dma.done %s188, 1024
        $region32: #{_lambda_.1} parent=27 // pred_fallthru
          _
        %s196 = sand.u32 %s52, 1
        %s197 = scalar_lea.sflag [#allocation3], %s196
        %s198 = sand.u32 %s52, 1
        %s199 = smul.addr %s198, 64
        %s200 = scalar_lea.vmem [#allocation2], %s199
        %p201 = pneg %p65
        %p202 = pneg %p62
        %p203 = scmp.lt.s32.totalorder %s25, 2
        %s204 = scalar_select %p203, %s25, 2
        %p205 = scmp.lt.s32.totalorder %s26, 0
        %s206 = scalar_select %p205, %s26, 0
        %s207 = sadd.s32 %s206, %s204
        %s208 = smul.addr %s207, 4
        %s209 = scalar_lea.vmem %s1, %s208
        %p210 = pneg %p93
        %p211 = pneg %p90
        %p212 = pneg %p125
        %p213 = pneg %p122
        %s214 = sand.u32 %s112, 1
        %s215 = scalar_lea.sflag [#allocation4], %s214
        %s216 = sand.u32 %s112, 1
        %s217 = smul.addr %s216, 64
        %s218 = scalar_lea.vmem [#allocation5], %s217
        %s219 = sadd.s32 %s25, 5
        %s220 = sadd.s32 %s219, %s26
        %s221 = smul.u32 4, %s220
        %p222 = scmp.lt.s32.totalorder %s25, 2
        %s223 = scalar_select %p222, %s25, 2
        %p224 = scmp.lt.s32.totalorder %s26, 0
        %s225 = scalar_select %p224, %s26, 0
        %s226 = sadd.s32 %s225, %s223
        %s227 = smul.addr %s226, 4
        %s228 = scalar_lea.vmem %s1, %s227
        %s229 = sadd.s32 %s25, 5
        %s230 = sadd.s32 %s229, %s26
        %s231 = smul.u32 4, %s230
        %v232 = vld [vmem:[%s191] sm:$0xff]
        %v233 = vld [vmem:[%s191 + $0x8] sm:$0xff]
        %v234 = vld [vmem:[%s191 + $0x10] sm:$0xff]
        %v235 = vld [vmem:[%s191 + $0x18] sm:$0xff]
        %v236 = vld [vmem:[%s191 + $0x20] sm:$0xff]
        %v237 = vld [vmem:[%s191 + $0x28] sm:$0xff]
        %v238 = vld [vmem:[%s191 + $0x30] sm:$0xff]
        %v239 = vld [vmem:[%s191 + $0x38] sm:$0xff]
        %v240 = vld [vmem:[%s228] sm:$0xf]
        %p241 = scmp.eq.s32.totalorder %s25, 0
        // Predicated region
        $region33: #{_lambda_.1} parent=27 // pred_check
          %p242 = pneg %p241
        $region34: #{_lambda_.1} parent=27 // pred_check_branch
          %244 = sbr.rel (%p242) target = $region36
        $region35: #{_lambda_.1} parent=27 // pred_region
          %253 = vrot.lane.b32.xlu0 %v232, 1
          %v254 = vpop.permute.xlu0 %253
          %255 = vrot.lane.b32.xlu0 %v233, 1
          %v256 = vpop.permute.xlu0 %255
          %257 = vrot.lane.b32.xlu0 %v234, 1
          %v258 = vpop.permute.xlu0 %257
          %259 = vrot.lane.b32.xlu0 %v235, 1
          %v260 = vpop.permute.xlu0 %259
          %261 = vrot.lane.b32.xlu0 %v236, 1
          %v262 = vpop.permute.xlu0 %261
          %263 = vrot.lane.b32.xlu0 %v237, 1
          %v264 = vpop.permute.xlu0 %263
          %265 = vrot.lane.b32.xlu0 %v238, 1
          %v266 = vpop.permute.xlu0 %265
          %267 = vrot.lane.b32.xlu0 %v239, 1
          %v268 = vpop.permute.xlu0 %267
          %vm277 = vcmask 7168
          %v278 = vsel %vm277, 0.0, %v254
          %v279 = vsel %vm277, 0.0, %v256
          %v280 = vsel %vm277, 0.0, %v258
          %v281 = vsel %vm277, 0.0, %v260
          %v282 = vsel %vm277, 0.0, %v262
          %v283 = vsel %vm277, 0.0, %v264
          %v284 = vsel %vm277, 0.0, %v266
          %v285 = vsel %vm277, 0.0, %v268
          %286 = vrot.lane.b32.xlu0 %v232, 127
          %v287 = vpop.permute.xlu0 %286
          %288 = vrot.lane.b32.xlu0 %v233, 127
          %v289 = vpop.permute.xlu0 %288
          %290 = vrot.lane.b32.xlu0 %v234, 127
          %v291 = vpop.permute.xlu0 %290
          %292 = vrot.lane.b32.xlu0 %v235, 127
          %v293 = vpop.permute.xlu0 %292
          %294 = vrot.lane.b32.xlu0 %v236, 127
          %v295 = vpop.permute.xlu0 %294
          %296 = vrot.lane.b32.xlu0 %v237, 127
          %v297 = vpop.permute.xlu0 %296
          %298 = vrot.lane.b32.xlu0 %v238, 127
          %v299 = vpop.permute.xlu0 %298
          %300 = vrot.lane.b32.xlu0 %v239, 127
          %v301 = vpop.permute.xlu0 %300
          %vm310 = vcmask 1039360
          %v311 = vsel %vm310, %v287, 0.0
          %v312 = vsel %vm310, %v289, 0.0
          %v313 = vsel %vm310, %v291, 0.0
          %v314 = vsel %vm310, %v293, 0.0
          %v315 = vsel %vm310, %v295, 0.0
          %v316 = vsel %vm310, %v297, 0.0
          %v317 = vsel %vm310, %v299, 0.0
          %v318 = vsel %vm310, %v301, 0.0
          %v321 = vunpack.c.l.s4 1966171168
          %v322 = vunpack.c.0.s8 %v321
          %v323 = vlaneseq
          %v324 = vshrl.u32 %v323, 7
          %v325 = vsub.s32 %v322, %v324
          %v326 = vrot.slane %v240, %v325
          %v327 = vcombine.high %v326, %v326
          %v329 = vunpack.c.l.s4 1966171168
          %v330 = vunpack.c.0.s8 %v329
          %v331 = vlaneseq
          %v332 = vshrl.u32 %v331, 7
          %v333 = vsub.s32 %v330, %v332
          %v334 = vrot.slane %v326, %v333
          %v336 = vunpack.c.l.s4 1966171168
          %v337 = vunpack.c.0.s8 %v336
          %v338 = vlaneseq
          %v339 = vshrl.u32 %v338, 7
          %v340 = vsub.s32 %v337, %v339
          %v341 = vrot.slane %v327, %v340
          %v342 = vcombine.high %v334, %v334
          %v343 = vcombine.high %v341, %v341
          %v344 = vlaneseq
          %v345 = vshrl.u32 %v344, 7
          %v346 = vsub.s32 0, %v345
          %v347 = vrot.slane %v334, %v346
          %v348 = vlaneseq
          %v349 = vshrl.u32 %v348, 7
          %v350 = vsub.s32 0, %v349
          %v351 = vrot.slane %v341, %v350
          %v352 = vlaneseq
          %v353 = vshrl.u32 %v352, 7
          %v354 = vsub.s32 0, %v353
          %v355 = vrot.slane %v342, %v354
          %v356 = vlaneseq
          %v357 = vshrl.u32 %v356, 7
          %v358 = vsub.s32 0, %v357
          %v359 = vrot.slane %v343, %v358
          %360 = vset.pattern.permute.xlu0 0
          %361 = vperm.xlu0 %360, %v347
          %v362 = vpop.permute.xlu0 %361
          %364 = vset.pattern.permute.xlu0 0
          %365 = vperm.xlu0 %364, %v351
          %v366 = vpop.permute.xlu0 %365
          %368 = vset.pattern.permute.xlu0 0
          %369 = vperm.xlu0 %368, %v355
          %v370 = vpop.permute.xlu0 %369
          %372 = vset.pattern.permute.xlu0 0
          %373 = vperm.xlu0 %372, %v359
          %v374 = vpop.permute.xlu0 %373
          %v376 = vmul.f32 %v278, %v362
          %v377 = vmul.f32 %v279, %v362
          %v378 = vmul.f32 %v280, %v366
          %v379 = vmul.f32 %v281, %v366
          %v380 = vmul.f32 %v282, %v370
          %v381 = vmul.f32 %v283, %v370
          %v382 = vmul.f32 %v284, %v374
          %v383 = vmul.f32 %v285, %v374
          %384 = vset.pattern.permute.xlu0 1
          %385 = vperm.xlu0 %384, %v347
          %v386 = vpop.permute.xlu0 %385
          %388 = vset.pattern.permute.xlu0 1
          %389 = vperm.xlu0 %388, %v351
          %v390 = vpop.permute.xlu0 %389
          %392 = vset.pattern.permute.xlu0 1
          %393 = vperm.xlu0 %392, %v355
          %v394 = vpop.permute.xlu0 %393
          %396 = vset.pattern.permute.xlu0 1
          %397 = vperm.xlu0 %396, %v359
          %v398 = vpop.permute.xlu0 %397
          %v400 = vmul.f32 %v232, %v386
          %v401 = vmul.f32 %v233, %v386
          %v402 = vmul.f32 %v234, %v390
          %v403 = vmul.f32 %v235, %v390
          %v404 = vmul.f32 %v236, %v394
          %v405 = vmul.f32 %v237, %v394
          %v406 = vmul.f32 %v238, %v398
          %v407 = vmul.f32 %v239, %v398
          %v408 = vadd.f32 %v376, %v400
          %v409 = vadd.f32 %v377, %v401
          %v410 = vadd.f32 %v378, %v402
          %v411 = vadd.f32 %v379, %v403
          %v412 = vadd.f32 %v380, %v404
          %v413 = vadd.f32 %v381, %v405
          %v414 = vadd.f32 %v382, %v406
          %v415 = vadd.f32 %v383, %v407
          %416 = vset.pattern.permute.xlu0 2
          %417 = vperm.xlu0 %416, %v347
          %v418 = vpop.permute.xlu0 %417
          %420 = vset.pattern.permute.xlu0 2
          %421 = vperm.xlu0 %420, %v351
          %v422 = vpop.permute.xlu0 %421
          %424 = vset.pattern.permute.xlu0 2
          %425 = vperm.xlu0 %424, %v355
          %v426 = vpop.permute.xlu0 %425
          %428 = vset.pattern.permute.xlu0 2
          %429 = vperm.xlu0 %428, %v359
          %v430 = vpop.permute.xlu0 %429
          %v432 = vmul.f32 %v311, %v418
          %v433 = vmul.f32 %v312, %v418
          %v434 = vmul.f32 %v313, %v422
          %v435 = vmul.f32 %v314, %v422
          %v436 = vmul.f32 %v315, %v426
          %v437 = vmul.f32 %v316, %v426
          %v438 = vmul.f32 %v317, %v430
          %v439 = vmul.f32 %v318, %v430
          %v440 = vadd.f32 %v408, %v432
          %v441 = vadd.f32 %v409, %v433
          %v442 = vadd.f32 %v410, %v434
          %v443 = vadd.f32 %v411, %v435
          %v444 = vadd.f32 %v412, %v436
          %v445 = vadd.f32 %v413, %v437
          %v446 = vadd.f32 %v414, %v438
          %v447 = vadd.f32 %v415, %v439
          %vm456 = vcmask 1040384
          %v457 = vrot.slane %v440, 7
          %v458 = vrot.slane %v441, 7
          %v459 = vsel %vm456, %v457, %v458
          %v460 = vrot.slane %v442, 7
          %v461 = vrot.slane %v443, 7
          %v462 = vsel %vm456, %v460, %v461
          %v463 = vrot.slane %v444, 7
          %v464 = vrot.slane %v445, 7
          %v465 = vsel %vm456, %v463, %v464
          %v466 = vrot.slane %v446, 7
          %v467 = vrot.slane %v447, 7
          %v468 = vsel %vm456, %v466, %v467
          %v477 = vsel %vm456, 0.0, %v457
          %v478 = vsel %vm456, 0.0, %v460
          %v479 = vsel %vm456, 0.0, %v463
          %v480 = vsel %vm456, 0.0, %v466
          %481 = vset.pattern.permute.xlu0 3
          %482 = vperm.xlu0 %481, %v347
          %v483 = vpop.permute.xlu0 %482
          %485 = vset.pattern.permute.xlu0 3
          %486 = vperm.xlu0 %485, %v351
          %v487 = vpop.permute.xlu0 %486
          %489 = vset.pattern.permute.xlu0 3
          %490 = vperm.xlu0 %489, %v355
          %v491 = vpop.permute.xlu0 %490
          %493 = vset.pattern.permute.xlu0 3
          %494 = vperm.xlu0 %493, %v359
          %v495 = vpop.permute.xlu0 %494
          %v497 = vmul.f32 %v278, %v483
          %v498 = vmul.f32 %v279, %v483
          %v499 = vmul.f32 %v280, %v487
          %v500 = vmul.f32 %v281, %v487
          %v501 = vmul.f32 %v282, %v491
          %v502 = vmul.f32 %v283, %v491
          %v503 = vmul.f32 %v284, %v495
          %v504 = vmul.f32 %v285, %v495
          %505 = vset.pattern.permute.xlu0 4
          %506 = vperm.xlu0 %505, %v347
          %v507 = vpop.permute.xlu0 %506
          %509 = vset.pattern.permute.xlu0 4
          %510 = vperm.xlu0 %509, %v351
          %v511 = vpop.permute.xlu0 %510
          %513 = vset.pattern.permute.xlu0 4
          %514 = vperm.xlu0 %513, %v355
          %v515 = vpop.permute.xlu0 %514
          %517 = vset.pattern.permute.xlu0 4
          %518 = vperm.xlu0 %517, %v359
          %v519 = vpop.permute.xlu0 %518
          %v521 = vmul.f32 %v232, %v507
          %v522 = vmul.f32 %v233, %v507
          %v523 = vmul.f32 %v234, %v511
          %v524 = vmul.f32 %v235, %v511
          %v525 = vmul.f32 %v236, %v515
          %v526 = vmul.f32 %v237, %v515
          %v527 = vmul.f32 %v238, %v519
          %v528 = vmul.f32 %v239, %v519
          %v529 = vadd.f32 %v497, %v521
          %v530 = vadd.f32 %v498, %v522
          %v531 = vadd.f32 %v499, %v523
          %v532 = vadd.f32 %v500, %v524
          %v533 = vadd.f32 %v501, %v525
          %v534 = vadd.f32 %v502, %v526
          %v535 = vadd.f32 %v503, %v527
          %v536 = vadd.f32 %v504, %v528
          %537 = vset.pattern.permute.xlu0 5
          %538 = vperm.xlu0 %537, %v347
          %v539 = vpop.permute.xlu0 %538
          %541 = vset.pattern.permute.xlu0 5
          %542 = vperm.xlu0 %541, %v351
          %v543 = vpop.permute.xlu0 %542
          %545 = vset.pattern.permute.xlu0 5
          %546 = vperm.xlu0 %545, %v355
          %v547 = vpop.permute.xlu0 %546
          %549 = vset.pattern.permute.xlu0 5
          %550 = vperm.xlu0 %549, %v359
          %v551 = vpop.permute.xlu0 %550
          %v553 = vmul.f32 %v311, %v539
          %v554 = vmul.f32 %v312, %v539
          %v555 = vmul.f32 %v313, %v543
          %v556 = vmul.f32 %v314, %v543
          %v557 = vmul.f32 %v315, %v547
          %v558 = vmul.f32 %v316, %v547
          %v559 = vmul.f32 %v317, %v551
          %v560 = vmul.f32 %v318, %v551
          %v561 = vadd.f32 %v529, %v553
          %v562 = vadd.f32 %v530, %v554
          %v563 = vadd.f32 %v531, %v555
          %v564 = vadd.f32 %v532, %v556
          %v565 = vadd.f32 %v533, %v557
          %v566 = vadd.f32 %v534, %v558
          %v567 = vadd.f32 %v535, %v559
          %v568 = vadd.f32 %v536, %v560
          %v569 = vadd.f32 %v477, %v561
          %v570 = vadd.f32 %v459, %v562
          %v571 = vadd.f32 %v478, %v563
          %v572 = vadd.f32 %v462, %v564
          %v573 = vadd.f32 %v479, %v565
          %v574 = vadd.f32 %v465, %v566
          %v575 = vadd.f32 %v480, %v567
          %v576 = vadd.f32 %v468, %v568
          %577 = vset.pattern.permute.xlu0 6
          %578 = vperm.xlu0 %577, %v347
          %v579 = vpop.permute.xlu0 %578
          %581 = vset.pattern.permute.xlu0 6
          %582 = vperm.xlu0 %581, %v351
          %v583 = vpop.permute.xlu0 %582
          %585 = vset.pattern.permute.xlu0 6
          %586 = vperm.xlu0 %585, %v355
          %v587 = vpop.permute.xlu0 %586
          %589 = vset.pattern.permute.xlu0 6
          %590 = vperm.xlu0 %589, %v359
          %v591 = vpop.permute.xlu0 %590
          %v593 = vmul.f32 %v278, %v579
          %v594 = vmul.f32 %v279, %v579
          %v595 = vmul.f32 %v280, %v583
          %v596 = vmul.f32 %v281, %v583
          %v597 = vmul.f32 %v282, %v587
          %v598 = vmul.f32 %v283, %v587
          %v599 = vmul.f32 %v284, %v591
          %v600 = vmul.f32 %v285, %v591
          %601 = vset.pattern.permute.xlu0 7
          %602 = vperm.xlu0 %601, %v347
          %v603 = vpop.permute.xlu0 %602
          %605 = vset.pattern.permute.xlu0 7
          %606 = vperm.xlu0 %605, %v351
          %v607 = vpop.permute.xlu0 %606
          %609 = vset.pattern.permute.xlu0 7
          %610 = vperm.xlu0 %609, %v355
          %v611 = vpop.permute.xlu0 %610
          %613 = vset.pattern.permute.xlu0 7
          %614 = vperm.xlu0 %613, %v359
          %v615 = vpop.permute.xlu0 %614
          %v617 = vmul.f32 %v232, %v603
          %v618 = vmul.f32 %v233, %v603
          %v619 = vmul.f32 %v234, %v607
          %v620 = vmul.f32 %v235, %v607
          %v621 = vmul.f32 %v236, %v611
          %v622 = vmul.f32 %v237, %v611
          %v623 = vmul.f32 %v238, %v615
          %v624 = vmul.f32 %v239, %v615
          %v625 = vadd.f32 %v593, %v617
          %v626 = vadd.f32 %v594, %v618
          %v627 = vadd.f32 %v595, %v619
          %v628 = vadd.f32 %v596, %v620
          %v629 = vadd.f32 %v597, %v621
          %v630 = vadd.f32 %v598, %v622
          %v631 = vadd.f32 %v599, %v623
          %v632 = vadd.f32 %v600, %v624
          %633 = vset.pattern.permute.xlu0 8
          %634 = vperm.xlu0 %633, %v347
          %v635 = vpop.permute.xlu0 %634
          %637 = vset.pattern.permute.xlu0 8
          %638 = vperm.xlu0 %637, %v351
          %v639 = vpop.permute.xlu0 %638
          %641 = vset.pattern.permute.xlu0 8
          %642 = vperm.xlu0 %641, %v355
          %v643 = vpop.permute.xlu0 %642
          %645 = vset.pattern.permute.xlu0 8
          %646 = vperm.xlu0 %645, %v359
          %v647 = vpop.permute.xlu0 %646
          %v649 = vmul.f32 %v311, %v635
          %v650 = vmul.f32 %v312, %v635
          %v651 = vmul.f32 %v313, %v639
          %v652 = vmul.f32 %v314, %v639
          %v653 = vmul.f32 %v315, %v643
          %v654 = vmul.f32 %v316, %v643
          %v655 = vmul.f32 %v317, %v647
          %v656 = vmul.f32 %v318, %v647
          %v657 = vadd.f32 %v625, %v649
          %v658 = vadd.f32 %v626, %v650
          %v659 = vadd.f32 %v627, %v651
          %v660 = vadd.f32 %v628, %v652
          %v661 = vadd.f32 %v629, %v653
          %v662 = vadd.f32 %v630, %v654
          %v663 = vadd.f32 %v631, %v655
          %v664 = vadd.f32 %v632, %v656
          %vm673 = vcmask 1046528
          %v674 = vrot.slane %v657, 1
          %v675 = vrot.slane %v658, 1
          %v676 = vsel %vm673, %v674, %v675
          %v677 = vrot.slane %v659, 1
          %v678 = vrot.slane %v660, 1
          %v679 = vsel %vm673, %v677, %v678
          %v680 = vrot.slane %v661, 1
          %v681 = vrot.slane %v662, 1
          %v682 = vsel %vm673, %v680, %v681
          %v683 = vrot.slane %v663, 1
          %v684 = vrot.slane %v664, 1
          %v685 = vsel %vm673, %v683, %v684
          %v694 = vsel %vm673, %v675, 0.0
          %v695 = vsel %vm673, %v678, 0.0
          %v696 = vsel %vm673, %v681, 0.0
          %v697 = vsel %vm673, %v684, 0.0
          %v698 = vadd.f32 %v569, %v676
          %v699 = vadd.f32 %v570, %v694
          %v700 = vadd.f32 %v571, %v679
          %v701 = vadd.f32 %v572, %v695
          %v702 = vadd.f32 %v573, %v682
          %v703 = vadd.f32 %v574, %v696
          %v704 = vadd.f32 %v575, %v685
          %v705 = vadd.f32 %v576, %v697
          %706 = vset.pattern.permute.xlu0 9
          %707 = vperm.xlu0 %706, %v347
          %v708 = vpop.permute.xlu0 %707
          %710 = vset.pattern.permute.xlu0 9
          %711 = vperm.xlu0 %710, %v351
          %v712 = vpop.permute.xlu0 %711
          %714 = vset.pattern.permute.xlu0 9
          %715 = vperm.xlu0 %714, %v355
          %v716 = vpop.permute.xlu0 %715
          %718 = vset.pattern.permute.xlu0 9
          %719 = vperm.xlu0 %718, %v359
          %v720 = vpop.permute.xlu0 %719
          %v722 = vadd.f32 %v698, %v708
          %v723 = vadd.f32 %v699, %v708
          %v724 = vadd.f32 %v700, %v712
          %v725 = vadd.f32 %v701, %v712
          %v726 = vadd.f32 %v702, %v716
          %v727 = vadd.f32 %v703, %v716
          %v728 = vadd.f32 %v704, %v720
          %v729 = vadd.f32 %v705, %v720
          %730 = vst [vmem:[%s218] sm:$0xff] %v722
          %731 = vst [vmem:[%s218 + $0x8] sm:$0xff] %v723
          %732 = vst [vmem:[%s218 + $0x10] sm:$0xff] %v724
          %733 = vst [vmem:[%s218 + $0x18] sm:$0xff] %v725
          %734 = vst [vmem:[%s218 + $0x20] sm:$0xff] %v726
          %735 = vst [vmem:[%s218 + $0x28] sm:$0xff] %v727
          %736 = vst [vmem:[%s218 + $0x30] sm:$0xff] %v728
          %737 = vst [vmem:[%s218 + $0x38] sm:$0xff] %v729
        $region36: #{_lambda_.1} parent=27 // pred_fallthru
          _
        %p738 = scmp.eq.s32.totalorder %s25, 1
        // Predicated region
        $region37: #{_lambda_.1} parent=27 // pred_check
          %p739 = pneg %p738
        $region38: #{_lambda_.1} parent=27 // pred_check_branch
          %741 = sbr.rel (%p739) target = $region40
        $region39: #{_lambda_.1} parent=27 // pred_region
          %750 = vrot.lane.b32.xlu0 %v232, 5
          %v751 = vpop.permute.xlu0 %750
          %752 = vrot.lane.b32.xlu0 %v233, 5
          %v753 = vpop.permute.xlu0 %752
          %754 = vrot.lane.b32.xlu0 %v234, 5
          %v755 = vpop.permute.xlu0 %754
          %756 = vrot.lane.b32.xlu0 %v235, 5
          %v757 = vpop.permute.xlu0 %756
          %758 = vrot.lane.b32.xlu0 %v236, 5
          %v759 = vpop.permute.xlu0 %758
          %760 = vrot.lane.b32.xlu0 %v237, 5
          %v761 = vpop.permute.xlu0 %760
          %762 = vrot.lane.b32.xlu0 %v238, 5
          %v763 = vpop.permute.xlu0 %762
          %764 = vrot.lane.b32.xlu0 %v239, 5
          %v765 = vpop.permute.xlu0 %764
          %vm774 = vcmask 39936
          %v775 = vsel %vm774, 0.0, %v751
          %v776 = vsel %vm774, 0.0, %v753
          %v777 = vsel %vm774, 0.0, %v755
          %v778 = vsel %vm774, 0.0, %v757
          %v779 = vsel %vm774, 0.0, %v759
          %v780 = vsel %vm774, 0.0, %v761
          %v781 = vsel %vm774, 0.0, %v763
          %v782 = vsel %vm774, 0.0, %v765
          %v785 = vunpack.c.l.s4 1966171168
          %v786 = vunpack.c.0.s8 %v785
          %v787 = vlaneseq
          %v788 = vshrl.u32 %v787, 7
          %v789 = vsub.s32 %v786, %v788
          %v790 = vrot.slane %v240, %v789
          %v791 = vcombine.high %v790, %v790
          %v793 = vunpack.c.l.s4 1966171168
          %v794 = vunpack.c.0.s8 %v793
          %v795 = vlaneseq
          %v796 = vshrl.u32 %v795, 7
          %v797 = vsub.s32 %v794, %v796
          %v798 = vrot.slane %v790, %v797
          %v800 = vunpack.c.l.s4 1966171168
          %v801 = vunpack.c.0.s8 %v800
          %v802 = vlaneseq
          %v803 = vshrl.u32 %v802, 7
          %v804 = vsub.s32 %v801, %v803
          %v805 = vrot.slane %v791, %v804
          %v806 = vcombine.high %v798, %v798
          %v807 = vcombine.high %v805, %v805
          %v808 = vlaneseq
          %v809 = vshrl.u32 %v808, 7
          %v810 = vsub.s32 0, %v809
          %v811 = vrot.slane %v798, %v810
          %v812 = vlaneseq
          %v813 = vshrl.u32 %v812, 7
          %v814 = vsub.s32 0, %v813
          %v815 = vrot.slane %v805, %v814
          %v816 = vlaneseq
          %v817 = vshrl.u32 %v816, 7
          %v818 = vsub.s32 0, %v817
          %v819 = vrot.slane %v806, %v818
          %v820 = vlaneseq
          %v821 = vshrl.u32 %v820, 7
          %v822 = vsub.s32 0, %v821
          %v823 = vrot.slane %v807, %v822
          %824 = vset.pattern.permute.xlu0 0
          %825 = vperm.xlu0 %824, %v811
          %v826 = vpop.permute.xlu0 %825
          %828 = vset.pattern.permute.xlu0 0
          %829 = vperm.xlu0 %828, %v815
          %v830 = vpop.permute.xlu0 %829
          %832 = vset.pattern.permute.xlu0 0
          %833 = vperm.xlu0 %832, %v819
          %v834 = vpop.permute.xlu0 %833
          %836 = vset.pattern.permute.xlu0 0
          %837 = vperm.xlu0 %836, %v823
          %v838 = vpop.permute.xlu0 %837
          %v840 = vmul.f32 %v775, %v826
          %v841 = vmul.f32 %v776, %v826
          %v842 = vmul.f32 %v777, %v830
          %v843 = vmul.f32 %v778, %v830
          %v844 = vmul.f32 %v779, %v834
          %v845 = vmul.f32 %v780, %v834
          %v846 = vmul.f32 %v781, %v838
          %v847 = vmul.f32 %v782, %v838
          %848 = vrot.lane.b32.xlu0 %v232, 4
          %v849 = vpop.permute.xlu0 %848
          %850 = vrot.lane.b32.xlu0 %v233, 4
          %v851 = vpop.permute.xlu0 %850
          %852 = vrot.lane.b32.xlu0 %v234, 4
          %v853 = vpop.permute.xlu0 %852
          %854 = vrot.lane.b32.xlu0 %v235, 4
          %v855 = vpop.permute.xlu0 %854
          %856 = vrot.lane.b32.xlu0 %v236, 4
          %v857 = vpop.permute.xlu0 %856
          %858 = vrot.lane.b32.xlu0 %v237, 4
          %v859 = vpop.permute.xlu0 %858
          %860 = vrot.lane.b32.xlu0 %v238, 4
          %v861 = vpop.permute.xlu0 %860
          %862 = vrot.lane.b32.xlu0 %v239, 4
          %v863 = vpop.permute.xlu0 %862
          %vm872 = vcmask 31744
          %v873 = vsel %vm872, 0.0, %v849
          %v874 = vsel %vm872, 0.0, %v851
          %v875 = vsel %vm872, 0.0, %v853
          %v876 = vsel %vm872, 0.0, %v855
          %v877 = vsel %vm872, 0.0, %v857
          %v878 = vsel %vm872, 0.0, %v859
          %v879 = vsel %vm872, 0.0, %v861
          %v880 = vsel %vm872, 0.0, %v863
          %881 = vset.pattern.permute.xlu0 1
          %882 = vperm.xlu0 %881, %v811
          %v883 = vpop.permute.xlu0 %882
          %885 = vset.pattern.permute.xlu0 1
          %886 = vperm.xlu0 %885, %v815
          %v887 = vpop.permute.xlu0 %886
          %889 = vset.pattern.permute.xlu0 1
          %890 = vperm.xlu0 %889, %v819
          %v891 = vpop.permute.xlu0 %890
          %893 = vset.pattern.permute.xlu0 1
          %894 = vperm.xlu0 %893, %v823
          %v895 = vpop.permute.xlu0 %894
          %v897 = vmul.f32 %v873, %v883
          %v898 = vmul.f32 %v874, %v883
          %v899 = vmul.f32 %v875, %v887
          %v900 = vmul.f32 %v876, %v887
          %v901 = vmul.f32 %v877, %v891
          %v902 = vmul.f32 %v878, %v891
          %v903 = vmul.f32 %v879, %v895
          %v904 = vmul.f32 %v880, %v895
          %v905 = vadd.f32 %v840, %v897
          %v906 = vadd.f32 %v841, %v898
          %v907 = vadd.f32 %v842, %v899
          %v908 = vadd.f32 %v843, %v900
          %v909 = vadd.f32 %v844, %v901
          %v910 = vadd.f32 %v845, %v902
          %v911 = vadd.f32 %v846, %v903
          %v912 = vadd.f32 %v847, %v904
          %913 = vrot.lane.b32.xlu0 %v232, 3
          %v914 = vpop.permute.xlu0 %913
          %915 = vrot.lane.b32.xlu0 %v233, 3
          %v916 = vpop.permute.xlu0 %915
          %917 = vrot.lane.b32.xlu0 %v234, 3
          %v918 = vpop.permute.xlu0 %917
          %919 = vrot.lane.b32.xlu0 %v235, 3
          %v920 = vpop.permute.xlu0 %919
          %921 = vrot.lane.b32.xlu0 %v236, 3
          %v922 = vpop.permute.xlu0 %921
          %923 = vrot.lane.b32.xlu0 %v237, 3
          %v924 = vpop.permute.xlu0 %923
          %925 = vrot.lane.b32.xlu0 %v238, 3
          %v926 = vpop.permute.xlu0 %925
          %927 = vrot.lane.b32.xlu0 %v239, 3
          %v928 = vpop.permute.xlu0 %927
          %vm937 = vcmask 23552
          %v938 = vsel %vm937, 0.0, %v914
          %v939 = vsel %vm937, 0.0, %v916
          %v940 = vsel %vm937, 0.0, %v918
          %v941 = vsel %vm937, 0.0, %v920
          %v942 = vsel %vm937, 0.0, %v922
          %v943 = vsel %vm937, 0.0, %v924
          %v944 = vsel %vm937, 0.0, %v926
          %v945 = vsel %vm937, 0.0, %v928
          %946 = vset.pattern.permute.xlu0 2
          %947 = vperm.xlu0 %946, %v811
          %v948 = vpop.permute.xlu0 %947
          %950 = vset.pattern.permute.xlu0 2
          %951 = vperm.xlu0 %950, %v815
          %v952 = vpop.permute.xlu0 %951
          %954 = vset.pattern.permute.xlu0 2
          %955 = vperm.xlu0 %954, %v819
          %v956 = vpop.permute.xlu0 %955
          %958 = vset.pattern.permute.xlu0 2
          %959 = vperm.xlu0 %958, %v823
          %v960 = vpop.permute.xlu0 %959
          %v962 = vmul.f32 %v938, %v948
          %v963 = vmul.f32 %v939, %v948
          %v964 = vmul.f32 %v940, %v952
          %v965 = vmul.f32 %v941, %v952
          %v966 = vmul.f32 %v942, %v956
          %v967 = vmul.f32 %v943, %v956
          %v968 = vmul.f32 %v944, %v960
          %v969 = vmul.f32 %v945, %v960
          %v970 = vadd.f32 %v905, %v962
          %v971 = vadd.f32 %v906, %v963
          %v972 = vadd.f32 %v907, %v964
          %v973 = vadd.f32 %v908, %v965
          %v974 = vadd.f32 %v909, %v966
          %v975 = vadd.f32 %v910, %v967
          %v976 = vadd.f32 %v911, %v968
          %v977 = vadd.f32 %v912, %v969
          %978 = vrot.lane.b32.xlu0 %v232, 2
          %v979 = vpop.permute.xlu0 %978
          %980 = vrot.lane.b32.xlu0 %v233, 2
          %v981 = vpop.permute.xlu0 %980
          %982 = vrot.lane.b32.xlu0 %v234, 2
          %v983 = vpop.permute.xlu0 %982
          %984 = vrot.lane.b32.xlu0 %v235, 2
          %v985 = vpop.permute.xlu0 %984
          %986 = vrot.lane.b32.xlu0 %v236, 2
          %v987 = vpop.permute.xlu0 %986
          %988 = vrot.lane.b32.xlu0 %v237, 2
          %v989 = vpop.permute.xlu0 %988
          %990 = vrot.lane.b32.xlu0 %v238, 2
          %v991 = vpop.permute.xlu0 %990
          %992 = vrot.lane.b32.xlu0 %v239, 2
          %v993 = vpop.permute.xlu0 %992
          %vm1002 = vcmask 15360
          %v1003 = vsel %vm1002, 0.0, %v979
          %v1004 = vsel %vm1002, 0.0, %v981
          %v1005 = vsel %vm1002, 0.0, %v983
          %v1006 = vsel %vm1002, 0.0, %v985
          %v1007 = vsel %vm1002, 0.0, %v987
          %v1008 = vsel %vm1002, 0.0, %v989
          %v1009 = vsel %vm1002, 0.0, %v991
          %v1010 = vsel %vm1002, 0.0, %v993
          %1011 = vset.pattern.permute.xlu0 3
          %1012 = vperm.xlu0 %1011, %v811
          %v1013 = vpop.permute.xlu0 %1012
          %1015 = vset.pattern.permute.xlu0 3
          %1016 = vperm.xlu0 %1015, %v815
          %v1017 = vpop.permute.xlu0 %1016
          %1019 = vset.pattern.permute.xlu0 3
          %1020 = vperm.xlu0 %1019, %v819
          %v1021 = vpop.permute.xlu0 %1020
          %1023 = vset.pattern.permute.xlu0 3
          %1024 = vperm.xlu0 %1023, %v823
          %v1025 = vpop.permute.xlu0 %1024
          %v1027 = vmul.f32 %v1003, %v1013
          %v1028 = vmul.f32 %v1004, %v1013
          %v1029 = vmul.f32 %v1005, %v1017
          %v1030 = vmul.f32 %v1006, %v1017
          %v1031 = vmul.f32 %v1007, %v1021
          %v1032 = vmul.f32 %v1008, %v1021
          %v1033 = vmul.f32 %v1009, %v1025
          %v1034 = vmul.f32 %v1010, %v1025
          %v1035 = vadd.f32 %v970, %v1027
          %v1036 = vadd.f32 %v971, %v1028
          %v1037 = vadd.f32 %v972, %v1029
          %v1038 = vadd.f32 %v973, %v1030
          %v1039 = vadd.f32 %v974, %v1031
          %v1040 = vadd.f32 %v975, %v1032
          %v1041 = vadd.f32 %v976, %v1033
          %v1042 = vadd.f32 %v977, %v1034
          %1043 = vrot.lane.b32.xlu0 %v232, 1
          %v1044 = vpop.permute.xlu0 %1043
          %1045 = vrot.lane.b32.xlu0 %v233, 1
          %v1046 = vpop.permute.xlu0 %1045
          %1047 = vrot.lane.b32.xlu0 %v234, 1
          %v1048 = vpop.permute.xlu0 %1047
          %1049 = vrot.lane.b32.xlu0 %v235, 1
          %v1050 = vpop.permute.xlu0 %1049
          %1051 = vrot.lane.b32.xlu0 %v236, 1
          %v1052 = vpop.permute.xlu0 %1051
          %1053 = vrot.lane.b32.xlu0 %v237, 1
          %v1054 = vpop.permute.xlu0 %1053
          %1055 = vrot.lane.b32.xlu0 %v238, 1
          %v1056 = vpop.permute.xlu0 %1055
          %1057 = vrot.lane.b32.xlu0 %v239, 1
          %v1058 = vpop.permute.xlu0 %1057
          %vm1067 = vcmask 7168
          %v1068 = vsel %vm1067, 0.0, %v1044
          %v1069 = vsel %vm1067, 0.0, %v1046
          %v1070 = vsel %vm1067, 0.0, %v1048
          %v1071 = vsel %vm1067, 0.0, %v1050
          %v1072 = vsel %vm1067, 0.0, %v1052
          %v1073 = vsel %vm1067, 0.0, %v1054
          %v1074 = vsel %vm1067, 0.0, %v1056
          %v1075 = vsel %vm1067, 0.0, %v1058
          %1076 = vset.pattern.permute.xlu0 4
          %1077 = vperm.xlu0 %1076, %v811
          %v1078 = vpop.permute.xlu0 %1077
          %1080 = vset.pattern.permute.xlu0 4
          %1081 = vperm.xlu0 %1080, %v815
          %v1082 = vpop.permute.xlu0 %1081
          %1084 = vset.pattern.permute.xlu0 4
          %1085 = vperm.xlu0 %1084, %v819
          %v1086 = vpop.permute.xlu0 %1085
          %1088 = vset.pattern.permute.xlu0 4
          %1089 = vperm.xlu0 %1088, %v823
          %v1090 = vpop.permute.xlu0 %1089
          %v1092 = vmul.f32 %v1068, %v1078
          %v1093 = vmul.f32 %v1069, %v1078
          %v1094 = vmul.f32 %v1070, %v1082
          %v1095 = vmul.f32 %v1071, %v1082
          %v1096 = vmul.f32 %v1072, %v1086
          %v1097 = vmul.f32 %v1073, %v1086
          %v1098 = vmul.f32 %v1074, %v1090
          %v1099 = vmul.f32 %v1075, %v1090
          %v1100 = vadd.f32 %v1035, %v1092
          %v1101 = vadd.f32 %v1036, %v1093
          %v1102 = vadd.f32 %v1037, %v1094
          %v1103 = vadd.f32 %v1038, %v1095
          %v1104 = vadd.f32 %v1039, %v1096
          %v1105 = vadd.f32 %v1040, %v1097
          %v1106 = vadd.f32 %v1041, %v1098
          %v1107 = vadd.f32 %v1042, %v1099
          %1108 = vset.pattern.permute.xlu0 5
          %1109 = vperm.xlu0 %1108, %v811
          %v1110 = vpop.permute.xlu0 %1109
          %1112 = vset.pattern.permute.xlu0 5
          %1113 = vperm.xlu0 %1112, %v815
          %v1114 = vpop.permute.xlu0 %1113
          %1116 = vset.pattern.permute.xlu0 5
          %1117 = vperm.xlu0 %1116, %v819
          %v1118 = vpop.permute.xlu0 %1117
          %1120 = vset.pattern.permute.xlu0 5
          %1121 = vperm.xlu0 %1120, %v823
          %v1122 = vpop.permute.xlu0 %1121
          %v1124 = vmul.f32 %v232, %v1110
          %v1125 = vmul.f32 %v233, %v1110
          %v1126 = vmul.f32 %v234, %v1114
          %v1127 = vmul.f32 %v235, %v1114
          %v1128 = vmul.f32 %v236, %v1118
          %v1129 = vmul.f32 %v237, %v1118
          %v1130 = vmul.f32 %v238, %v1122
          %v1131 = vmul.f32 %v239, %v1122
          %v1132 = vadd.f32 %v1100, %v1124
          %v1133 = vadd.f32 %v1101, %v1125
          %v1134 = vadd.f32 %v1102, %v1126
          %v1135 = vadd.f32 %v1103, %v1127
          %v1136 = vadd.f32 %v1104, %v1128
          %v1137 = vadd.f32 %v1105, %v1129
          %v1138 = vadd.f32 %v1106, %v1130
          %v1139 = vadd.f32 %v1107, %v1131
          %1140 = vrot.lane.b32.xlu0 %v232, 127
          %v1141 = vpop.permute.xlu0 %1140
          %1142 = vrot.lane.b32.xlu0 %v233, 127
          %v1143 = vpop.permute.xlu0 %1142
          %1144 = vrot.lane.b32.xlu0 %v234, 127
          %v1145 = vpop.permute.xlu0 %1144
          %1146 = vrot.lane.b32.xlu0 %v235, 127
          %v1147 = vpop.permute.xlu0 %1146
          %1148 = vrot.lane.b32.xlu0 %v236, 127
          %v1149 = vpop.permute.xlu0 %1148
          %1150 = vrot.lane.b32.xlu0 %v237, 127
          %v1151 = vpop.permute.xlu0 %1150
          %1152 = vrot.lane.b32.xlu0 %v238, 127
          %v1153 = vpop.permute.xlu0 %1152
          %1154 = vrot.lane.b32.xlu0 %v239, 127
          %v1155 = vpop.permute.xlu0 %1154
          %vm1164 = vcmask 1039360
          %v1165 = vsel %vm1164, %v1141, 0.0
          %v1166 = vsel %vm1164, %v1143, 0.0
          %v1167 = vsel %vm1164, %v1145, 0.0
          %v1168 = vsel %vm1164, %v1147, 0.0
          %v1169 = vsel %vm1164, %v1149, 0.0
          %v1170 = vsel %vm1164, %v1151, 0.0
          %v1171 = vsel %vm1164, %v1153, 0.0
          %v1172 = vsel %vm1164, %v1155, 0.0
          %1173 = vset.pattern.permute.xlu0 6
          %1174 = vperm.xlu0 %1173, %v811
          %v1175 = vpop.permute.xlu0 %1174
          %1177 = vset.pattern.permute.xlu0 6
          %1178 = vperm.xlu0 %1177, %v815
          %v1179 = vpop.permute.xlu0 %1178
          %1181 = vset.pattern.permute.xlu0 6
          %1182 = vperm.xlu0 %1181, %v819
          %v1183 = vpop.permute.xlu0 %1182
          %1185 = vset.pattern.permute.xlu0 6
          %1186 = vperm.xlu0 %1185, %v823
          %v1187 = vpop.permute.xlu0 %1186
          %v1189 = vmul.f32 %v1165, %v1175
          %v1190 = vmul.f32 %v1166, %v1175
          %v1191 = vmul.f32 %v1167, %v1179
          %v1192 = vmul.f32 %v1168, %v1179
          %v1193 = vmul.f32 %v1169, %v1183
          %v1194 = vmul.f32 %v1170, %v1183
          %v1195 = vmul.f32 %v1171, %v1187
          %v1196 = vmul.f32 %v1172, %v1187
          %v1197 = vadd.f32 %v1132, %v1189
          %v1198 = vadd.f32 %v1133, %v1190
          %v1199 = vadd.f32 %v1134, %v1191
          %v1200 = vadd.f32 %v1135, %v1192
          %v1201 = vadd.f32 %v1136, %v1193
          %v1202 = vadd.f32 %v1137, %v1194
          %v1203 = vadd.f32 %v1138, %v1195
          %v1204 = vadd.f32 %v1139, %v1196
          %1205 = vrot.lane.b32.xlu0 %v232, 126
          %v1206 = vpop.permute.xlu0 %1205
          %1207 = vrot.lane.b32.xlu0 %v233, 126
          %v1208 = vpop.permute.xlu0 %1207
          %1209 = vrot.lane.b32.xlu0 %v234, 126
          %v1210 = vpop.permute.xlu0 %1209
          %1211 = vrot.lane.b32.xlu0 %v235, 126
          %v1212 = vpop.permute.xlu0 %1211
          %1213 = vrot.lane.b32.xlu0 %v236, 126
          %v1214 = vpop.permute.xlu0 %1213
          %1215 = vrot.lane.b32.xlu0 %v237, 126
          %v1216 = vpop.permute.xlu0 %1215
          %1217 = vrot.lane.b32.xlu0 %v238, 126
          %v1218 = vpop.permute.xlu0 %1217
          %1219 = vrot.lane.b32.xlu0 %v239, 126
          %v1220 = vpop.permute.xlu0 %1219
          %vm1229 = vcmask 1031168
          %v1230 = vsel %vm1229, %v1206, 0.0
          %v1231 = vsel %vm1229, %v1208, 0.0
          %v1232 = vsel %vm1229, %v1210, 0.0
          %v1233 = vsel %vm1229, %v1212, 0.0
          %v1234 = vsel %vm1229, %v1214, 0.0
          %v1235 = vsel %vm1229, %v1216, 0.0
          %v1236 = vsel %vm1229, %v1218, 0.0
          %v1237 = vsel %vm1229, %v1220, 0.0
          %1238 = vset.pattern.permute.xlu0 7
          %1239 = vperm.xlu0 %1238, %v811
          %v1240 = vpop.permute.xlu0 %1239
          %1242 = vset.pattern.permute.xlu0 7
          %1243 = vperm.xlu0 %1242, %v815
          %v1244 = vpop.permute.xlu0 %1243
          %1246 = vset.pattern.permute.xlu0 7
          %1247 = vperm.xlu0 %1246, %v819
          %v1248 = vpop.permute.xlu0 %1247
          %1250 = vset.pattern.permute.xlu0 7
          %1251 = vperm.xlu0 %1250, %v823
          %v1252 = vpop.permute.xlu0 %1251
          %v1254 = vmul.f32 %v1230, %v1240
          %v1255 = vmul.f32 %v1231, %v1240
          %v1256 = vmul.f32 %v1232, %v1244
          %v1257 = vmul.f32 %v1233, %v1244
          %v1258 = vmul.f32 %v1234, %v1248
          %v1259 = vmul.f32 %v1235, %v1248
          %v1260 = vmul.f32 %v1236, %v1252
          %v1261 = vmul.f32 %v1237, %v1252
          %v1262 = vadd.f32 %v1197, %v1254
          %v1263 = vadd.f32 %v1198, %v1255
          %v1264 = vadd.f32 %v1199, %v1256
          %v1265 = vadd.f32 %v1200, %v1257
          %v1266 = vadd.f32 %v1201, %v1258
          %v1267 = vadd.f32 %v1202, %v1259
          %v1268 = vadd.f32 %v1203, %v1260
          %v1269 = vadd.f32 %v1204, %v1261
          %1270 = vrot.lane.b32.xlu0 %v232, 125
          %v1271 = vpop.permute.xlu0 %1270
          %1272 = vrot.lane.b32.xlu0 %v233, 125
          %v1273 = vpop.permute.xlu0 %1272
          %1274 = vrot.lane.b32.xlu0 %v234, 125
          %v1275 = vpop.permute.xlu0 %1274
          %1276 = vrot.lane.b32.xlu0 %v235, 125
          %v1277 = vpop.permute.xlu0 %1276
          %1278 = vrot.lane.b32.xlu0 %v236, 125
          %v1279 = vpop.permute.xlu0 %1278
          %1280 = vrot.lane.b32.xlu0 %v237, 125
          %v1281 = vpop.permute.xlu0 %1280
          %1282 = vrot.lane.b32.xlu0 %v238, 125
          %v1283 = vpop.permute.xlu0 %1282
          %1284 = vrot.lane.b32.xlu0 %v239, 125
          %v1285 = vpop.permute.xlu0 %1284
          %vm1294 = vcmask 1022976
          %v1295 = vsel %vm1294, %v1271, 0.0
          %v1296 = vsel %vm1294, %v1273, 0.0
          %v1297 = vsel %vm1294, %v1275, 0.0
          %v1298 = vsel %vm1294, %v1277, 0.0
          %v1299 = vsel %vm1294, %v1279, 0.0
          %v1300 = vsel %vm1294, %v1281, 0.0
          %v1301 = vsel %vm1294, %v1283, 0.0
          %v1302 = vsel %vm1294, %v1285, 0.0
          %1303 = vset.pattern.permute.xlu0 8
          %1304 = vperm.xlu0 %1303, %v811
          %v1305 = vpop.permute.xlu0 %1304
          %1307 = vset.pattern.permute.xlu0 8
          %1308 = vperm.xlu0 %1307, %v815
          %v1309 = vpop.permute.xlu0 %1308
          %1311 = vset.pattern.permute.xlu0 8
          %1312 = vperm.xlu0 %1311, %v819
          %v1313 = vpop.permute.xlu0 %1312
          %1315 = vset.pattern.permute.xlu0 8
          %1316 = vperm.xlu0 %1315, %v823
          %v1317 = vpop.permute.xlu0 %1316
          %v1319 = vmul.f32 %v1295, %v1305
          %v1320 = vmul.f32 %v1296, %v1305
          %v1321 = vmul.f32 %v1297, %v1309
          %v1322 = vmul.f32 %v1298, %v1309
          %v1323 = vmul.f32 %v1299, %v1313
          %v1324 = vmul.f32 %v1300, %v1313
          %v1325 = vmul.f32 %v1301, %v1317
          %v1326 = vmul.f32 %v1302, %v1317
          %v1327 = vadd.f32 %v1262, %v1319
          %v1328 = vadd.f32 %v1263, %v1320
          %v1329 = vadd.f32 %v1264, %v1321
          %v1330 = vadd.f32 %v1265, %v1322
          %v1331 = vadd.f32 %v1266, %v1323
          %v1332 = vadd.f32 %v1267, %v1324
          %v1333 = vadd.f32 %v1268, %v1325
          %v1334 = vadd.f32 %v1269, %v1326
          %1335 = vrot.lane.b32.xlu0 %v232, 124
          %v1336 = vpop.permute.xlu0 %1335
          %1337 = vrot.lane.b32.xlu0 %v233, 124
          %v1338 = vpop.permute.xlu0 %1337
          %1339 = vrot.lane.b32.xlu0 %v234, 124
          %v1340 = vpop.permute.xlu0 %1339
          %1341 = vrot.lane.b32.xlu0 %v235, 124
          %v1342 = vpop.permute.xlu0 %1341
          %1343 = vrot.lane.b32.xlu0 %v236, 124
          %v1344 = vpop.permute.xlu0 %1343
          %1345 = vrot.lane.b32.xlu0 %v237, 124
          %v1346 = vpop.permute.xlu0 %1345
          %1347 = vrot.lane.b32.xlu0 %v238, 124
          %v1348 = vpop.permute.xlu0 %1347
          %1349 = vrot.lane.b32.xlu0 %v239, 124
          %v1350 = vpop.permute.xlu0 %1349
          %vm1359 = vcmask 1014784
          %v1360 = vsel %vm1359, %v1336, 0.0
          %v1361 = vsel %vm1359, %v1338, 0.0
          %v1362 = vsel %vm1359, %v1340, 0.0
          %v1363 = vsel %vm1359, %v1342, 0.0
          %v1364 = vsel %vm1359, %v1344, 0.0
          %v1365 = vsel %vm1359, %v1346, 0.0
          %v1366 = vsel %vm1359, %v1348, 0.0
          %v1367 = vsel %vm1359, %v1350, 0.0
          %1368 = vset.pattern.permute.xlu0 9
          %1369 = vperm.xlu0 %1368, %v811
          %v1370 = vpop.permute.xlu0 %1369
          %1372 = vset.pattern.permute.xlu0 9
          %1373 = vperm.xlu0 %1372, %v815
          %v1374 = vpop.permute.xlu0 %1373
          %1376 = vset.pattern.permute.xlu0 9
          %1377 = vperm.xlu0 %1376, %v819
          %v1378 = vpop.permute.xlu0 %1377
          %1380 = vset.pattern.permute.xlu0 9
          %1381 = vperm.xlu0 %1380, %v823
          %v1382 = vpop.permute.xlu0 %1381
          %v1384 = vmul.f32 %v1360, %v1370
          %v1385 = vmul.f32 %v1361, %v1370
          %v1386 = vmul.f32 %v1362, %v1374
          %v1387 = vmul.f32 %v1363, %v1374
          %v1388 = vmul.f32 %v1364, %v1378
          %v1389 = vmul.f32 %v1365, %v1378
          %v1390 = vmul.f32 %v1366, %v1382
          %v1391 = vmul.f32 %v1367, %v1382
          %v1392 = vadd.f32 %v1327, %v1384
          %v1393 = vadd.f32 %v1328, %v1385
          %v1394 = vadd.f32 %v1329, %v1386
          %v1395 = vadd.f32 %v1330, %v1387
          %v1396 = vadd.f32 %v1331, %v1388
          %v1397 = vadd.f32 %v1332, %v1389
          %v1398 = vadd.f32 %v1333, %v1390
          %v1399 = vadd.f32 %v1334, %v1391
          %1400 = vrot.lane.b32.xlu0 %v232, 123
          %v1401 = vpop.permute.xlu0 %1400
          %1402 = vrot.lane.b32.xlu0 %v233, 123
          %v1403 = vpop.permute.xlu0 %1402
          %1404 = vrot.lane.b32.xlu0 %v234, 123
          %v1405 = vpop.permute.xlu0 %1404
          %1406 = vrot.lane.b32.xlu0 %v235, 123
          %v1407 = vpop.permute.xlu0 %1406
          %1408 = vrot.lane.b32.xlu0 %v236, 123
          %v1409 = vpop.permute.xlu0 %1408
          %1410 = vrot.lane.b32.xlu0 %v237, 123
          %v1411 = vpop.permute.xlu0 %1410
          %1412 = vrot.lane.b32.xlu0 %v238, 123
          %v1413 = vpop.permute.xlu0 %1412
          %1414 = vrot.lane.b32.xlu0 %v239, 123
          %v1415 = vpop.permute.xlu0 %1414
          %vm1424 = vcmask 1006592
          %v1425 = vsel %vm1424, %v1401, 0.0
          %v1426 = vsel %vm1424, %v1403, 0.0
          %v1427 = vsel %vm1424, %v1405, 0.0
          %v1428 = vsel %vm1424, %v1407, 0.0
          %v1429 = vsel %vm1424, %v1409, 0.0
          %v1430 = vsel %vm1424, %v1411, 0.0
          %v1431 = vsel %vm1424, %v1413, 0.0
          %v1432 = vsel %vm1424, %v1415, 0.0
          %1433 = vset.pattern.permute.xlu0 10
          %1434 = vperm.xlu0 %1433, %v811
          %v1435 = vpop.permute.xlu0 %1434
          %1437 = vset.pattern.permute.xlu0 10
          %1438 = vperm.xlu0 %1437, %v815
          %v1439 = vpop.permute.xlu0 %1438
          %1441 = vset.pattern.permute.xlu0 10
          %1442 = vperm.xlu0 %1441, %v819
          %v1443 = vpop.permute.xlu0 %1442
          %1445 = vset.pattern.permute.xlu0 10
          %1446 = vperm.xlu0 %1445, %v823
          %v1447 = vpop.permute.xlu0 %1446
          %v1449 = vmul.f32 %v1425, %v1435
          %v1450 = vmul.f32 %v1426, %v1435
          %v1451 = vmul.f32 %v1427, %v1439
          %v1452 = vmul.f32 %v1428, %v1439
          %v1453 = vmul.f32 %v1429, %v1443
          %v1454 = vmul.f32 %v1430, %v1443
          %v1455 = vmul.f32 %v1431, %v1447
          %v1456 = vmul.f32 %v1432, %v1447
          %v1457 = vadd.f32 %v1392, %v1449
          %v1458 = vadd.f32 %v1393, %v1450
          %v1459 = vadd.f32 %v1394, %v1451
          %v1460 = vadd.f32 %v1395, %v1452
          %v1461 = vadd.f32 %v1396, %v1453
          %v1462 = vadd.f32 %v1397, %v1454
          %v1463 = vadd.f32 %v1398, %v1455
          %v1464 = vadd.f32 %v1399, %v1456
          %1465 = vset.pattern.permute.xlu0 11
          %1466 = vperm.xlu0 %1465, %v811
          %v1467 = vpop.permute.xlu0 %1466
          %1469 = vset.pattern.permute.xlu0 11
          %1470 = vperm.xlu0 %1469, %v815
          %v1471 = vpop.permute.xlu0 %1470
          %1473 = vset.pattern.permute.xlu0 11
          %1474 = vperm.xlu0 %1473, %v819
          %v1475 = vpop.permute.xlu0 %1474
          %1477 = vset.pattern.permute.xlu0 11
          %1478 = vperm.xlu0 %1477, %v823
          %v1479 = vpop.permute.xlu0 %1478
          %v1481 = vadd.f32 %v1457, %v1467
          %v1482 = vadd.f32 %v1458, %v1467
          %v1483 = vadd.f32 %v1459, %v1471
          %v1484 = vadd.f32 %v1460, %v1471
          %v1485 = vadd.f32 %v1461, %v1475
          %v1486 = vadd.f32 %v1462, %v1475
          %v1487 = vadd.f32 %v1463, %v1479
          %v1488 = vadd.f32 %v1464, %v1479
          %1489 = vst [vmem:[%s218] sm:$0xff] %v1481
          %1490 = vst [vmem:[%s218 + $0x8] sm:$0xff] %v1482
          %1491 = vst [vmem:[%s218 + $0x10] sm:$0xff] %v1483
          %1492 = vst [vmem:[%s218 + $0x18] sm:$0xff] %v1484
          %1493 = vst [vmem:[%s218 + $0x20] sm:$0xff] %v1485
          %1494 = vst [vmem:[%s218 + $0x28] sm:$0xff] %v1486
          %1495 = vst [vmem:[%s218 + $0x30] sm:$0xff] %v1487
          %1496 = vst [vmem:[%s218 + $0x38] sm:$0xff] %v1488
        $region40: #{_lambda_.1} parent=27 // pred_fallthru
          _
        %p1497 = scmp.eq.s32.totalorder %s25, 2
        // Predicated region
        $region41: #{_lambda_.1} parent=27 // pred_check
          %p1498 = pneg %p1497
        $region42: #{_lambda_.1} parent=27 // pred_check_branch
          %1500 = sbr.rel (%p1498) target = $region44
        $region43: #{_lambda_.1} parent=27 // pred_region
          %vm1509 = vcmask 1044480
          %v1510 = vrot.slane %v232, 3
          %v1511 = vrot.slane %v233, 3
          %v1512 = vsel %vm1509, %v1510, %v1511
          %v1513 = vrot.slane %v234, 3
          %v1514 = vrot.slane %v235, 3
          %v1515 = vsel %vm1509, %v1513, %v1514
          %v1516 = vrot.slane %v236, 3
          %v1517 = vrot.slane %v237, 3
          %v1518 = vsel %vm1509, %v1516, %v1517
          %v1519 = vrot.slane %v238, 3
          %v1520 = vrot.slane %v239, 3
          %v1521 = vsel %vm1509, %v1519, %v1520
          %v1530 = vsel %vm1509, 0.0, %v1510
          %v1531 = vsel %vm1509, 0.0, %v1513
          %v1532 = vsel %vm1509, 0.0, %v1516
          %v1533 = vsel %vm1509, 0.0, %v1519
          %v1536 = vunpack.c.l.s4 1966171168
          %v1537 = vunpack.c.0.s8 %v1536
          %v1538 = vlaneseq
          %v1539 = vshrl.u32 %v1538, 7
          %v1540 = vsub.s32 %v1537, %v1539
          %v1541 = vrot.slane %v240, %v1540
          %v1542 = vcombine.high %v1541, %v1541
          %v1544 = vunpack.c.l.s4 1966171168
          %v1545 = vunpack.c.0.s8 %v1544
          %v1546 = vlaneseq
          %v1547 = vshrl.u32 %v1546, 7
          %v1548 = vsub.s32 %v1545, %v1547
          %v1549 = vrot.slane %v1541, %v1548
          %v1551 = vunpack.c.l.s4 1966171168
          %v1552 = vunpack.c.0.s8 %v1551
          %v1553 = vlaneseq
          %v1554 = vshrl.u32 %v1553, 7
          %v1555 = vsub.s32 %v1552, %v1554
          %v1556 = vrot.slane %v1542, %v1555
          %v1557 = vcombine.high %v1549, %v1549
          %v1558 = vcombine.high %v1556, %v1556
          %v1559 = vlaneseq
          %v1560 = vshrl.u32 %v1559, 7
          %v1561 = vsub.s32 0, %v1560
          %v1562 = vrot.slane %v1549, %v1561
          %v1563 = vlaneseq
          %v1564 = vshrl.u32 %v1563, 7
          %v1565 = vsub.s32 0, %v1564
          %v1566 = vrot.slane %v1556, %v1565
          %v1567 = vlaneseq
          %v1568 = vshrl.u32 %v1567, 7
          %v1569 = vsub.s32 0, %v1568
          %v1570 = vrot.slane %v1557, %v1569
          %v1571 = vlaneseq
          %v1572 = vshrl.u32 %v1571, 7
          %v1573 = vsub.s32 0, %v1572
          %v1574 = vrot.slane %v1558, %v1573
          %1575 = vset.pattern.permute.xlu0 0
          %1576 = vperm.xlu0 %1575, %v1562
          %v1577 = vpop.permute.xlu0 %1576
          %1579 = vset.pattern.permute.xlu0 0
          %1580 = vperm.xlu0 %1579, %v1566
          %v1581 = vpop.permute.xlu0 %1580
          %1583 = vset.pattern.permute.xlu0 0
          %1584 = vperm.xlu0 %1583, %v1570
          %v1585 = vpop.permute.xlu0 %1584
          %1587 = vset.pattern.permute.xlu0 0
          %1588 = vperm.xlu0 %1587, %v1574
          %v1589 = vpop.permute.xlu0 %1588
          %v1591 = vmul.f32 %v1530, %v1577
          %v1592 = vmul.f32 %v1512, %v1577
          %v1593 = vmul.f32 %v1531, %v1581
          %v1594 = vmul.f32 %v1515, %v1581
          %v1595 = vmul.f32 %v1532, %v1585
          %v1596 = vmul.f32 %v1518, %v1585
          %v1597 = vmul.f32 %v1533, %v1589
          %v1598 = vmul.f32 %v1521, %v1589
          %vm1599 = vcmask 1043456
          %v1600 = vrot.slane %v232, 4
          %v1601 = vrot.slane %v233, 4
          %v1602 = vsel %vm1599, %v1600, %v1601
          %v1603 = vrot.slane %v234, 4
          %v1604 = vrot.slane %v235, 4
          %v1605 = vsel %vm1599, %v1603, %v1604
          %v1606 = vrot.slane %v236, 4
          %v1607 = vrot.slane %v237, 4
          %v1608 = vsel %vm1599, %v1606, %v1607
          %v1609 = vrot.slane %v238, 4
          %v1610 = vrot.slane %v239, 4
          %v1611 = vsel %vm1599, %v1609, %v1610
          %v1620 = vsel %vm1599, 0.0, %v1600
          %v1621 = vsel %vm1599, 0.0, %v1603
          %v1622 = vsel %vm1599, 0.0, %v1606
          %v1623 = vsel %vm1599, 0.0, %v1609
          %1624 = vset.pattern.permute.xlu0 1
          %1625 = vperm.xlu0 %1624, %v1562
          %v1626 = vpop.permute.xlu0 %1625
          %1628 = vset.pattern.permute.xlu0 1
          %1629 = vperm.xlu0 %1628, %v1566
          %v1630 = vpop.permute.xlu0 %1629
          %1632 = vset.pattern.permute.xlu0 1
          %1633 = vperm.xlu0 %1632, %v1570
          %v1634 = vpop.permute.xlu0 %1633
          %1636 = vset.pattern.permute.xlu0 1
          %1637 = vperm.xlu0 %1636, %v1574
          %v1638 = vpop.permute.xlu0 %1637
          %v1640 = vmul.f32 %v1620, %v1626
          %v1641 = vmul.f32 %v1602, %v1626
          %v1642 = vmul.f32 %v1621, %v1630
          %v1643 = vmul.f32 %v1605, %v1630
          %v1644 = vmul.f32 %v1622, %v1634
          %v1645 = vmul.f32 %v1608, %v1634
          %v1646 = vmul.f32 %v1623, %v1638
          %v1647 = vmul.f32 %v1611, %v1638
          %v1648 = vadd.f32 %v1591, %v1640
          %v1649 = vadd.f32 %v1592, %v1641
          %v1650 = vadd.f32 %v1593, %v1642
          %v1651 = vadd.f32 %v1594, %v1643
          %v1652 = vadd.f32 %v1595, %v1644
          %v1653 = vadd.f32 %v1596, %v1645
          %v1654 = vadd.f32 %v1597, %v1646
          %v1655 = vadd.f32 %v1598, %v1647
          %vm1656 = vcmask 1042432
          %v1657 = vrot.slane %v232, 5
          %v1658 = vrot.slane %v233, 5
          %v1659 = vsel %vm1656, %v1657, %v1658
          %v1660 = vrot.slane %v234, 5
          %v1661 = vrot.slane %v235, 5
          %v1662 = vsel %vm1656, %v1660, %v1661
          %v1663 = vrot.slane %v236, 5
          %v1664 = vrot.slane %v237, 5
          %v1665 = vsel %vm1656, %v1663, %v1664
          %v1666 = vrot.slane %v238, 5
          %v1667 = vrot.slane %v239, 5
          %v1668 = vsel %vm1656, %v1666, %v1667
          %v1677 = vsel %vm1656, 0.0, %v1657
          %v1678 = vsel %vm1656, 0.0, %v1660
          %v1679 = vsel %vm1656, 0.0, %v1663
          %v1680 = vsel %vm1656, 0.0, %v1666
          %1681 = vset.pattern.permute.xlu0 2
          %1682 = vperm.xlu0 %1681, %v1562
          %v1683 = vpop.permute.xlu0 %1682
          %1685 = vset.pattern.permute.xlu0 2
          %1686 = vperm.xlu0 %1685, %v1566
          %v1687 = vpop.permute.xlu0 %1686
          %1689 = vset.pattern.permute.xlu0 2
          %1690 = vperm.xlu0 %1689, %v1570
          %v1691 = vpop.permute.xlu0 %1690
          %1693 = vset.pattern.permute.xlu0 2
          %1694 = vperm.xlu0 %1693, %v1574
          %v1695 = vpop.permute.xlu0 %1694
          %v1697 = vmul.f32 %v1677, %v1683
          %v1698 = vmul.f32 %v1659, %v1683
          %v1699 = vmul.f32 %v1678, %v1687
          %v1700 = vmul.f32 %v1662, %v1687
          %v1701 = vmul.f32 %v1679, %v1691
          %v1702 = vmul.f32 %v1665, %v1691
          %v1703 = vmul.f32 %v1680, %v1695
          %v1704 = vmul.f32 %v1668, %v1695
          %v1705 = vadd.f32 %v1648, %v1697
          %v1706 = vadd.f32 %v1649, %v1698
          %v1707 = vadd.f32 %v1650, %v1699
          %v1708 = vadd.f32 %v1651, %v1700
          %v1709 = vadd.f32 %v1652, %v1701
          %v1710 = vadd.f32 %v1653, %v1702
          %v1711 = vadd.f32 %v1654, %v1703
          %v1712 = vadd.f32 %v1655, %v1704
          %vm1713 = vcmask 1041408
          %v1714 = vrot.slane %v232, 6
          %v1715 = vrot.slane %v233, 6
          %v1716 = vsel %vm1713, %v1714, %v1715
          %v1717 = vrot.slane %v234, 6
          %v1718 = vrot.slane %v235, 6
          %v1719 = vsel %vm1713, %v1717, %v1718
          %v1720 = vrot.slane %v236, 6
          %v1721 = vrot.slane %v237, 6
          %v1722 = vsel %vm1713, %v1720, %v1721
          %v1723 = vrot.slane %v238, 6
          %v1724 = vrot.slane %v239, 6
          %v1725 = vsel %vm1713, %v1723, %v1724
          %v1734 = vsel %vm1713, 0.0, %v1714
          %v1735 = vsel %vm1713, 0.0, %v1717
          %v1736 = vsel %vm1713, 0.0, %v1720
          %v1737 = vsel %vm1713, 0.0, %v1723
          %1738 = vset.pattern.permute.xlu0 3
          %1739 = vperm.xlu0 %1738, %v1562
          %v1740 = vpop.permute.xlu0 %1739
          %1742 = vset.pattern.permute.xlu0 3
          %1743 = vperm.xlu0 %1742, %v1566
          %v1744 = vpop.permute.xlu0 %1743
          %1746 = vset.pattern.permute.xlu0 3
          %1747 = vperm.xlu0 %1746, %v1570
          %v1748 = vpop.permute.xlu0 %1747
          %1750 = vset.pattern.permute.xlu0 3
          %1751 = vperm.xlu0 %1750, %v1574
          %v1752 = vpop.permute.xlu0 %1751
          %v1754 = vmul.f32 %v1734, %v1740
          %v1755 = vmul.f32 %v1716, %v1740
          %v1756 = vmul.f32 %v1735, %v1744
          %v1757 = vmul.f32 %v1719, %v1744
          %v1758 = vmul.f32 %v1736, %v1748
          %v1759 = vmul.f32 %v1722, %v1748
          %v1760 = vmul.f32 %v1737, %v1752
          %v1761 = vmul.f32 %v1725, %v1752
          %v1762 = vadd.f32 %v1705, %v1754
          %v1763 = vadd.f32 %v1706, %v1755
          %v1764 = vadd.f32 %v1707, %v1756
          %v1765 = vadd.f32 %v1708, %v1757
          %v1766 = vadd.f32 %v1709, %v1758
          %v1767 = vadd.f32 %v1710, %v1759
          %v1768 = vadd.f32 %v1711, %v1760
          %v1769 = vadd.f32 %v1712, %v1761
          %vm1770 = vcmask 1040384
          %v1771 = vrot.slane %v232, 7
          %v1772 = vrot.slane %v233, 7
          %v1773 = vsel %vm1770, %v1771, %v1772
          %v1774 = vrot.slane %v234, 7
          %v1775 = vrot.slane %v235, 7
          %v1776 = vsel %vm1770, %v1774, %v1775
          %v1777 = vrot.slane %v236, 7
          %v1778 = vrot.slane %v237, 7
          %v1779 = vsel %vm1770, %v1777, %v1778
          %v1780 = vrot.slane %v238, 7
          %v1781 = vrot.slane %v239, 7
          %v1782 = vsel %vm1770, %v1780, %v1781
          %v1791 = vsel %vm1770, 0.0, %v1771
          %v1792 = vsel %vm1770, 0.0, %v1774
          %v1793 = vsel %vm1770, 0.0, %v1777
          %v1794 = vsel %vm1770, 0.0, %v1780
          %1795 = vset.pattern.permute.xlu0 4
          %1796 = vperm.xlu0 %1795, %v1562
          %v1797 = vpop.permute.xlu0 %1796
          %1799 = vset.pattern.permute.xlu0 4
          %1800 = vperm.xlu0 %1799, %v1566
          %v1801 = vpop.permute.xlu0 %1800
          %1803 = vset.pattern.permute.xlu0 4
          %1804 = vperm.xlu0 %1803, %v1570
          %v1805 = vpop.permute.xlu0 %1804
          %1807 = vset.pattern.permute.xlu0 4
          %1808 = vperm.xlu0 %1807, %v1574
          %v1809 = vpop.permute.xlu0 %1808
          %v1811 = vmul.f32 %v1791, %v1797
          %v1812 = vmul.f32 %v1773, %v1797
          %v1813 = vmul.f32 %v1792, %v1801
          %v1814 = vmul.f32 %v1776, %v1801
          %v1815 = vmul.f32 %v1793, %v1805
          %v1816 = vmul.f32 %v1779, %v1805
          %v1817 = vmul.f32 %v1794, %v1809
          %v1818 = vmul.f32 %v1782, %v1809
          %v1819 = vadd.f32 %v1762, %v1811
          %v1820 = vadd.f32 %v1763, %v1812
          %v1821 = vadd.f32 %v1764, %v1813
          %v1822 = vadd.f32 %v1765, %v1814
          %v1823 = vadd.f32 %v1766, %v1815
          %v1824 = vadd.f32 %v1767, %v1816
          %v1825 = vadd.f32 %v1768, %v1817
          %v1826 = vadd.f32 %v1769, %v1818
          %1827 = vset.pattern.permute.xlu0 5
          %1828 = vperm.xlu0 %1827, %v1562
          %v1829 = vpop.permute.xlu0 %1828
          %1831 = vset.pattern.permute.xlu0 5
          %1832 = vperm.xlu0 %1831, %v1566
          %v1833 = vpop.permute.xlu0 %1832
          %1835 = vset.pattern.permute.xlu0 5
          %1836 = vperm.xlu0 %1835, %v1570
          %v1837 = vpop.permute.xlu0 %1836
          %1839 = vset.pattern.permute.xlu0 5
          %1840 = vperm.xlu0 %1839, %v1574
          %v1841 = vpop.permute.xlu0 %1840
          %v1843 = vmul.f32 %v232, %v1829
          %v1844 = vmul.f32 %v233, %v1829
          %v1845 = vmul.f32 %v234, %v1833
          %v1846 = vmul.f32 %v235, %v1833
          %v1847 = vmul.f32 %v236, %v1837
          %v1848 = vmul.f32 %v237, %v1837
          %v1849 = vmul.f32 %v238, %v1841
          %v1850 = vmul.f32 %v239, %v1841
          %v1851 = vadd.f32 %v1819, %v1843
          %v1852 = vadd.f32 %v1820, %v1844
          %v1853 = vadd.f32 %v1821, %v1845
          %v1854 = vadd.f32 %v1822, %v1846
          %v1855 = vadd.f32 %v1823, %v1847
          %v1856 = vadd.f32 %v1824, %v1848
          %v1857 = vadd.f32 %v1825, %v1849
          %v1858 = vadd.f32 %v1826, %v1850
          %vm1859 = vcmask 1046528
          %v1860 = vrot.slane %v232, 1
          %v1861 = vrot.slane %v233, 1
          %v1862 = vsel %vm1859, %v1860, %v1861
          %v1863 = vrot.slane %v234, 1
          %v1864 = vrot.slane %v235, 1
          %v1865 = vsel %vm1859, %v1863, %v1864
          %v1866 = vrot.slane %v236, 1
          %v1867 = vrot.slane %v237, 1
          %v1868 = vsel %vm1859, %v1866, %v1867
          %v1869 = vrot.slane %v238, 1
          %v1870 = vrot.slane %v239, 1
          %v1871 = vsel %vm1859, %v1869, %v1870
          %v1880 = vsel %vm1859, %v1861, 0.0
          %v1881 = vsel %vm1859, %v1864, 0.0
          %v1882 = vsel %vm1859, %v1867, 0.0
          %v1883 = vsel %vm1859, %v1870, 0.0
          %1884 = vset.pattern.permute.xlu0 6
          %1885 = vperm.xlu0 %1884, %v1562
          %v1886 = vpop.permute.xlu0 %1885
          %1888 = vset.pattern.permute.xlu0 6
          %1889 = vperm.xlu0 %1888, %v1566
          %v1890 = vpop.permute.xlu0 %1889
          %1892 = vset.pattern.permute.xlu0 6
          %1893 = vperm.xlu0 %1892, %v1570
          %v1894 = vpop.permute.xlu0 %1893
          %1896 = vset.pattern.permute.xlu0 6
          %1897 = vperm.xlu0 %1896, %v1574
          %v1898 = vpop.permute.xlu0 %1897
          %v1900 = vmul.f32 %v1862, %v1886
          %v1901 = vmul.f32 %v1880, %v1886
          %v1902 = vmul.f32 %v1865, %v1890
          %v1903 = vmul.f32 %v1881, %v1890
          %v1904 = vmul.f32 %v1868, %v1894
          %v1905 = vmul.f32 %v1882, %v1894
          %v1906 = vmul.f32 %v1871, %v1898
          %v1907 = vmul.f32 %v1883, %v1898
          %v1908 = vadd.f32 %v1851, %v1900
          %v1909 = vadd.f32 %v1852, %v1901
          %v1910 = vadd.f32 %v1853, %v1902
          %v1911 = vadd.f32 %v1854, %v1903
          %v1912 = vadd.f32 %v1855, %v1904
          %v1913 = vadd.f32 %v1856, %v1905
          %v1914 = vadd.f32 %v1857, %v1906
          %v1915 = vadd.f32 %v1858, %v1907
          %vm1916 = vcmask 1045504
          %v1917 = vrot.slane %v232, 2
          %v1918 = vrot.slane %v233, 2
          %v1919 = vsel %vm1916, %v1917, %v1918
          %v1920 = vrot.slane %v234, 2
          %v1921 = vrot.slane %v235, 2
          %v1922 = vsel %vm1916, %v1920, %v1921
          %v1923 = vrot.slane %v236, 2
          %v1924 = vrot.slane %v237, 2
          %v1925 = vsel %vm1916, %v1923, %v1924
          %v1926 = vrot.slane %v238, 2
          %v1927 = vrot.slane %v239, 2
          %v1928 = vsel %vm1916, %v1926, %v1927
          %v1937 = vsel %vm1916, %v1918, 0.0
          %v1938 = vsel %vm1916, %v1921, 0.0
          %v1939 = vsel %vm1916, %v1924, 0.0
          %v1940 = vsel %vm1916, %v1927, 0.0
          %1941 = vset.pattern.permute.xlu0 7
          %1942 = vperm.xlu0 %1941, %v1562
          %v1943 = vpop.permute.xlu0 %1942
          %1945 = vset.pattern.permute.xlu0 7
          %1946 = vperm.xlu0 %1945, %v1566
          %v1947 = vpop.permute.xlu0 %1946
          %1949 = vset.pattern.permute.xlu0 7
          %1950 = vperm.xlu0 %1949, %v1570
          %v1951 = vpop.permute.xlu0 %1950
          %1953 = vset.pattern.permute.xlu0 7
          %1954 = vperm.xlu0 %1953, %v1574
          %v1955 = vpop.permute.xlu0 %1954
          %v1957 = vmul.f32 %v1919, %v1943
          %v1958 = vmul.f32 %v1937, %v1943
          %v1959 = vmul.f32 %v1922, %v1947
          %v1960 = vmul.f32 %v1938, %v1947
          %v1961 = vmul.f32 %v1925, %v1951
          %v1962 = vmul.f32 %v1939, %v1951
          %v1963 = vmul.f32 %v1928, %v1955
          %v1964 = vmul.f32 %v1940, %v1955
          %v1965 = vadd.f32 %v1908, %v1957
          %v1966 = vadd.f32 %v1909, %v1958
          %v1967 = vadd.f32 %v1910, %v1959
          %v1968 = vadd.f32 %v1911, %v1960
          %v1969 = vadd.f32 %v1912, %v1961
          %v1970 = vadd.f32 %v1913, %v1962
          %v1971 = vadd.f32 %v1914, %v1963
          %v1972 = vadd.f32 %v1915, %v1964
          %v1977 = vsel %vm1509, %v1511, 0.0
          %v1978 = vsel %vm1509, %v1514, 0.0
          %v1979 = vsel %vm1509, %v1517, 0.0
          %v1980 = vsel %vm1509, %v1520, 0.0
          %1981 = vset.pattern.permute.xlu0 8
          %1982 = vperm.xlu0 %1981, %v1562
          %v1983 = vpop.permute.xlu0 %1982
          %1985 = vset.pattern.permute.xlu0 8
          %1986 = vperm.xlu0 %1985, %v1566
          %v1987 = vpop.permute.xlu0 %1986
          %1989 = vset.pattern.permute.xlu0 8
          %1990 = vperm.xlu0 %1989, %v1570
          %v1991 = vpop.permute.xlu0 %1990
          %1993 = vset.pattern.permute.xlu0 8
          %1994 = vperm.xlu0 %1993, %v1574
          %v1995 = vpop.permute.xlu0 %1994
          %v1997 = vmul.f32 %v1512, %v1983
          %v1998 = vmul.f32 %v1977, %v1983
          %v1999 = vmul.f32 %v1515, %v1987
          %v2000 = vmul.f32 %v1978, %v1987
          %v2001 = vmul.f32 %v1518, %v1991
          %v2002 = vmul.f32 %v1979, %v1991
          %v2003 = vmul.f32 %v1521, %v1995
          %v2004 = vmul.f32 %v1980, %v1995
          %v2005 = vadd.f32 %v1965, %v1997
          %v2006 = vadd.f32 %v1966, %v1998
          %v2007 = vadd.f32 %v1967, %v1999
          %v2008 = vadd.f32 %v1968, %v2000
          %v2009 = vadd.f32 %v1969, %v2001
          %v2010 = vadd.f32 %v1970, %v2002
          %v2011 = vadd.f32 %v1971, %v2003
          %v2012 = vadd.f32 %v1972, %v2004
          %v2017 = vsel %vm1599, %v1601, 0.0
          %v2018 = vsel %vm1599, %v1604, 0.0
          %v2019 = vsel %vm1599, %v1607, 0.0
          %v2020 = vsel %vm1599, %v1610, 0.0
          %2021 = vset.pattern.permute.xlu0 9
          %2022 = vperm.xlu0 %2021, %v1562
          %v2023 = vpop.permute.xlu0 %2022
          %2025 = vset.pattern.permute.xlu0 9
          %2026 = vperm.xlu0 %2025, %v1566
          %v2027 = vpop.permute.xlu0 %2026
          %2029 = vset.pattern.permute.xlu0 9
          %2030 = vperm.xlu0 %2029, %v1570
          %v2031 = vpop.permute.xlu0 %2030
          %2033 = vset.pattern.permute.xlu0 9
          %2034 = vperm.xlu0 %2033, %v1574
          %v2035 = vpop.permute.xlu0 %2034
          %v2037 = vmul.f32 %v1602, %v2023
          %v2038 = vmul.f32 %v2017, %v2023
          %v2039 = vmul.f32 %v1605, %v2027
          %v2040 = vmul.f32 %v2018, %v2027
          %v2041 = vmul.f32 %v1608, %v2031
          %v2042 = vmul.f32 %v2019, %v2031
          %v2043 = vmul.f32 %v1611, %v2035
          %v2044 = vmul.f32 %v2020, %v2035
          %v2045 = vadd.f32 %v2005, %v2037
          %v2046 = vadd.f32 %v2006, %v2038
          %v2047 = vadd.f32 %v2007, %v2039
          %v2048 = vadd.f32 %v2008, %v2040
          %v2049 = vadd.f32 %v2009, %v2041
          %v2050 = vadd.f32 %v2010, %v2042
          %v2051 = vadd.f32 %v2011, %v2043
          %v2052 = vadd.f32 %v2012, %v2044
          %v2057 = vsel %vm1656, %v1658, 0.0
          %v2058 = vsel %vm1656, %v1661, 0.0
          %v2059 = vsel %vm1656, %v1664, 0.0
          %v2060 = vsel %vm1656, %v1667, 0.0
          %2061 = vset.pattern.permute.xlu0 10
          %2062 = vperm.xlu0 %2061, %v1562
          %v2063 = vpop.permute.xlu0 %2062
          %2065 = vset.pattern.permute.xlu0 10
          %2066 = vperm.xlu0 %2065, %v1566
          %v2067 = vpop.permute.xlu0 %2066
          %2069 = vset.pattern.permute.xlu0 10
          %2070 = vperm.xlu0 %2069, %v1570
          %v2071 = vpop.permute.xlu0 %2070
          %2073 = vset.pattern.permute.xlu0 10
          %2074 = vperm.xlu0 %2073, %v1574
          %v2075 = vpop.permute.xlu0 %2074
          %v2077 = vmul.f32 %v1659, %v2063
          %v2078 = vmul.f32 %v2057, %v2063
          %v2079 = vmul.f32 %v1662, %v2067
          %v2080 = vmul.f32 %v2058, %v2067
          %v2081 = vmul.f32 %v1665, %v2071
          %v2082 = vmul.f32 %v2059, %v2071
          %v2083 = vmul.f32 %v1668, %v2075
          %v2084 = vmul.f32 %v2060, %v2075
          %v2085 = vadd.f32 %v2045, %v2077
          %v2086 = vadd.f32 %v2046, %v2078
          %v2087 = vadd.f32 %v2047, %v2079
          %v2088 = vadd.f32 %v2048, %v2080
          %v2089 = vadd.f32 %v2049, %v2081
          %v2090 = vadd.f32 %v2050, %v2082
          %v2091 = vadd.f32 %v2051, %v2083
          %v2092 = vadd.f32 %v2052, %v2084
          %2093 = vset.pattern.permute.xlu0 11
          %2094 = vperm.xlu0 %2093, %v1562
          %v2095 = vpop.permute.xlu0 %2094
          %2097 = vset.pattern.permute.xlu0 11
          %2098 = vperm.xlu0 %2097, %v1566
          %v2099 = vpop.permute.xlu0 %2098
          %2101 = vset.pattern.permute.xlu0 11
          %2102 = vperm.xlu0 %2101, %v1570
          %v2103 = vpop.permute.xlu0 %2102
          %2105 = vset.pattern.permute.xlu0 11
          %2106 = vperm.xlu0 %2105, %v1574
          %v2107 = vpop.permute.xlu0 %2106
          %v2109 = vadd.f32 %v2085, %v2095
          %v2110 = vadd.f32 %v2086, %v2095
          %v2111 = vadd.f32 %v2087, %v2099
          %v2112 = vadd.f32 %v2088, %v2099
          %v2113 = vadd.f32 %v2089, %v2103
          %v2114 = vadd.f32 %v2090, %v2103
          %v2115 = vadd.f32 %v2091, %v2107
          %v2116 = vadd.f32 %v2092, %v2107
          %2117 = vst [vmem:[%s218] sm:$0xff] %v2109
          %2118 = vst [vmem:[%s218 + $0x8] sm:$0xff] %v2110
          %2119 = vst [vmem:[%s218 + $0x10] sm:$0xff] %v2111
          %2120 = vst [vmem:[%s218 + $0x18] sm:$0xff] %v2112
          %2121 = vst [vmem:[%s218 + $0x20] sm:$0xff] %v2113
          %2122 = vst [vmem:[%s218 + $0x28] sm:$0xff] %v2114
          %2123 = vst [vmem:[%s218 + $0x30] sm:$0xff] %v2115
          %2124 = vst [vmem:[%s218 + $0x38] sm:$0xff] %v2116
        $region44: #{_lambda_.1} parent=27 // pred_fallthru
          _
        %s2125 = sand.u32 %s112, 1
        %s2126 = scalar_lea.sflag [#allocation4], %s2125
        %s2127 = sand.u32 %s112, 1
        %s2128 = smul.addr %s2127, 64
        %s2129 = scalar_lea.vmem [#allocation5], %s2128
        // Predicated region
        $region45: #{_lambda_.1} parent=27 // pred_check
          %p2130 = pneg %p122
        $region46: #{_lambda_.1} parent=27 // pred_check_branch
          %2132 = sbr.rel (%p2130) target = $region48
        $region47: #{_lambda_.1} parent=27 // pred_region
          %s2133 = sadd.s32 %s25, 5
          %s2134 = sadd.s32 %s2133, %s26
          %s2135 = smul.u32 4, %s2134
          %s2137 = ssub.s32 1024, 1024
          %2138 = vsyncadd %s2126, %s2137
          %s2139 = smul.addr %s2135, 2
          %s2140 = smul.addr %s24, 64
          %s2141 = sadd.s32 %s2139, %s2140
          %s2142 = smul.addr %s2141, 128
          %s2143 = scalar_lea.hbm %s2, %s2142
          %s2144 = sshll.u32 %s2129, 4
          %s2145 = int_to_ptr.vmem [resolvable:$true] %s2144
          %2150 = dma.vmem_to_hbm [thread:$0]  %s2145, 1024, %s2143, %s2126, 128, 128, 8
        $region48: #{_lambda_.1} parent=27 // pred_fallthru
          _
      $region28: #{_lambda_.1} parent=5 // pred_fallthru
        _
      %p2151 = scmp.le.s32.totalorder 2, %s14
      // Predicated region
      $region49: #{_lambda_.1} parent=5 // pred_check
        %p2152 = pneg %p2151
      $region50: #{_lambda_.1} parent=5 // pred_check_branch
        %2154 = sbr.rel (%p2152) target = $region52
      $region51: #{_lambda_.1} parent=5 // pred_region
        %s2155 = ssub.s32 %s14, 2
        // Predicated region
        $region53: #{_lambda_.1} parent=51 // pred_check
          %p2156 = pneg %p128
        $region54: #{_lambda_.1} parent=51 // pred_check_branch
          %2158 = sbr.rel (%p2156) target = $region56
        $region55: #{_lambda_.1} parent=51 // pred_region
          %s2159 = sand.u32 %s113, 1
          %s2160 = scalar_lea.sflag [#allocation4], %s2159
          %s2161 = sand.u32 %s113, 1
          %s2162 = smul.addr %s2161, 64
          %s2163 = scalar_lea.vmem [#allocation5], %s2162
          %2164 = dma.done %s2160, 1024
        $region56: #{_lambda_.1} parent=51 // pred_fallthru
          _
      $region52: #{_lambda_.1} parent=5 // pred_fallthru
        _
    $region6: #{_lambda_.1} parent=1 // loop_footer
      %s18 = sadd.s32 1, %s14
    $region7: #{_lambda_.1} parent=1 // loop_footer_branch
      %13 = sbr.rel target = $region3
    $region8: #{_lambda_.1} parent=1 // loop_exit
      _
    %2165 = vsyncpa [#allocation3], 1
    %s2166 = scalar_lea.sflag [#allocation3], 1
    %2167 = vsyncpa %s2166, 1
    %2168 = vsyncpa [#allocation4], 1
    %s2169 = scalar_lea.sflag [#allocation4], 1
    %2170 = vsyncpa %s2169, 1

</llo_original>
